<compile_context>
chip_gen: v5e
topology: v5e:2x2
jax: 0.10.0
libtpu: 0.0.40
codegen_flags: <defaults>
</compile_context>

<pallas_src>
import functools

import jax
import jax.numpy as jnp
from jax import lax
from jax.experimental import pallas as pl
from jax.experimental.pallas import tpu as pltpu

_BIG = 9999.0


def _triplet_kernel(mean_ref, embt_ref, embf_ref, labt_ref, labf_ref,
                    sqt_ref, sqf_ref, o_ref, *, n, tm, margin):
    i = pl.program_id(0)
    n_pad = embf_ref.shape[0]

    xt = embt_ref[...]                      # (TM, D)   compute dtype (f32 or bf16)
    xf = embf_ref[...]                      # (Npad, D)

    # gram[r, j] = <x_r, x_j>  -- MXU, contract feature dim of both operands, f32 accumulate
    gram = lax.dot_general(xt, xf, (((1,), (1,)), ((), ())),
                           preferred_element_type=jnp.float32)        # (TM, Npad)

    # mat_sim row block = label_tile @ label_full.T  -- also on the MXU
    sim = lax.dot_general(labt_ref[...], labf_ref[...], (((1,), (1,)), ((), ())),
                          preferred_element_type=jnp.float32)         # (TM, Npad)

    # squared pairwise distances; mine on dist^2 (monotonic under clamp+sqrt)
    dist2 = sqt_ref[...] + sqf_ref[...] - 2.0 * gram                  # (TM, Npad)
    dist2 = jnp.maximum(dist2, 1e-12)       # torch .clamp(min=1e-12) before sqrt

    col = lax.broadcasted_iota(jnp.int32, (tm, n_pad), 1)
    col_valid = col < n                                               # mask padded columns
    mean_sim = mean_ref[0, 0]
    is_pos = jnp.logical_and(sim > mean_sim, col_valid)
    is_neg = jnp.logical_and(sim <= mean_sim, col_valid)

    neg_inf = jnp.float32(-jnp.inf)
    pos_inf = jnp.float32(jnp.inf)
    max_pos2 = jnp.max(jnp.where(is_pos, dist2, neg_inf), axis=1, keepdims=True)
    min_neg2 = jnp.min(jnp.where(is_neg, dist2, pos_inf), axis=1, keepdims=True)
    max_all2 = jnp.max(jnp.where(col_valid, dist2, neg_inf), axis=1, keepdims=True)
    min_all2 = jnp.min(jnp.where(col_valid, dist2, pos_inf), axis=1, keepdims=True)

    has_pos = max_pos2 > neg_inf            # row has at least one positive under the mask
    has_neg = min_neg2 < pos_inf            # row has at least one negative under the mask

    # exact value of  max_j(dist - 9999*(1-mask))  /  min_j(dist + 9999*mask),
    # sqrt only on the selected per-row values.
    dist_ap = jnp.where(has_pos,
                        jnp.sqrt(jnp.maximum(max_pos2, 1e-12)),
                        jnp.sqrt(jnp.maximum(max_all2, 1e-12)) - _BIG)
    dist_an = jnp.where(has_neg,
                        jnp.sqrt(jnp.maximum(min_neg2, 1e-12)),
                        jnp.sqrt(jnp.maximum(min_all2, 1e-12)) + _BIG)

    row = lax.broadcasted_iota(jnp.int32, (tm, 1), 0) + i * tm
    row_valid = row < n                                               # mask padded rows

    # MarginRankingLoss(margin)(dist_an, dist_ap, y=1) per row = relu(dist_ap - dist_an + margin)
    hinge = jnp.maximum(dist_ap - dist_an + margin, 0.0)
    loss_part = jnp.sum(jnp.where(row_valid, hinge, 0.0))
    prec_part = jnp.sum(jnp.where(jnp.logical_and(row_valid, dist_an > dist_ap), 1.0, 0.0))

    lane = lax.broadcasted_iota(jnp.int32, (1, 1, 128), 2)
    o_ref[...] = jnp.where(lane == 0, loss_part,
                           jnp.where(lane == 1, prec_part, 0.0)).astype(jnp.float32)


@functools.partial(jax.jit, static_argnames=("margin", "normalize_feature", "tile_m"))
def triplet_loss(emb, label, margin, normalize_feature=False, tile_m=128):
    """Returns (loss, prec) matching TripletLoss.forward(emb, label)."""
    n, d = emb.shape
    c = label.shape[1]

    # keep bf16 operands bf16 into the MXU; everything else in f32
    compute_dtype = jnp.bfloat16 if emb.dtype == jnp.bfloat16 else jnp.float32

    x = emb.astype(jnp.float32)
    if normalize_feature:
        # F.normalize: x / max(||x||_2, 1e-12)
        norm = jnp.sqrt(jnp.sum(x * x, axis=1, keepdims=True))
        x = x / jnp.maximum(norm, 1e-12)
    x = x.astype(compute_dtype)

    lab = label.astype(jnp.float32)

    # mean of mat_sim = ||sum_i label_i||^2 / N^2, from the UNPADDED labels (cheap, exact)
    s = jnp.sum(lab, axis=0)
    mean_sim = (jnp.sum(s * s) / jnp.float32(n * n)).reshape(1, 1).astype(jnp.float32)

    # pad N up to a multiple of the row tile -> lane-dense (TM, Npad) temporaries
    tm = int(tile_m)
    n_pad = ((n + tm - 1) // tm) * tm
    pad = n_pad - n
    x_p = jnp.pad(x, ((0, pad), (0, 0)))
    lab_p = jnp.pad(lab, ((0, pad), (0, 0)))

    sq = jnp.sum(x_p.astype(jnp.float32) ** 2, axis=1)    # (Npad,)
    sq_col = sq.reshape(n_pad, 1)
    sq_row = sq.reshape(1, n_pad)

    num_tiles = n_pad // tm
    kernel = functools.partial(_triplet_kernel, n=n, tm=tm, margin=float(margin))

    itemsize = jnp.dtype(compute_dtype).itemsize
    cost = pl.CostEstimate(
        flops=2 * n_pad * n_pad * (d + c),
        transcendentals=2 * n_pad,
        bytes_accessed=(2 * n_pad * d * itemsize + 2 * n_pad * c * 4
                        + 2 * n_pad * 4 + num_tiles * 128 * 4),
    )

    partial = pl.pallas_call(
        kernel,
        out_shape=jax.ShapeDtypeStruct((num_tiles, 1, 128), jnp.float32),
        grid=(num_tiles,),
        in_specs=[
            pl.BlockSpec(memory_space=pltpu.MemorySpace.SMEM),    # mean_sim (1,1) scalar
            pl.BlockSpec((tm, d), lambda i: (i, 0)),              # emb row tile
            pl.BlockSpec((n_pad, d), lambda i: (0, 0)),           # emb full (VMEM resident)
            pl.BlockSpec((tm, c), lambda i: (i, 0)),              # label row tile
            pl.BlockSpec((n_pad, c), lambda i: (0, 0)),           # label full (VMEM resident)
            pl.BlockSpec((tm, 1), lambda i: (i, 0)),              # ||x||^2 row tile
            pl.BlockSpec((1, n_pad), lambda i: (0, 0)),           # ||x||^2 full row
        ],
        out_specs=pl.BlockSpec((1, 1, 128), lambda i: (i, 0, 0)),
        compiler_params=pltpu.CompilerParams(dimension_semantics=("parallel",)),
        cost_estimate=cost,
    )(mean_sim, x_p, x_p, lab_p, lab_p, sq_col, sq_row)

    loss = jnp.sum(partial[:, 0, 0]) / n
    prec = jnp.sum(partial[:, 0, 1]) / n
    return loss, prec


def _reference_loss(emb, label, margin, normalize_feature=False):
    """Pure-JAX mirror of the PyTorch TripletLoss.forward."""
    x = emb.astype(jnp.float32)
    if normalize_feature:
        norm = jnp.sqrt(jnp.sum(x * x, axis=1, keepdims=True))
        x = x / jnp.maximum(norm, 1e-12)
    sq = jnp.sum(x * x, axis=1, keepdims=True)
    gram = jnp.dot(x, x.T, precision=lax.Precision.HIGHEST)
    dist = jnp.sqrt(jnp.maximum(sq + sq.T - 2.0 * gram, 1e-12))
    lab = label.astype(jnp.float32)
    sim = jnp.dot(lab, lab.T, precision=lax.Precision.HIGHEST)
    mask = (sim > jnp.mean(sim)).astype(jnp.float32)
    dist_ap = jnp.max(dist - _BIG * (1.0 - mask), axis=1)
    dist_an = jnp.min(dist + _BIG * mask, axis=1)
    loss = jnp.mean(jnp.maximum(dist_ap - dist_an + margin, 0.0))
    prec = jnp.mean((dist_an > dist_ap).astype(jnp.float32))
    return loss, prec


if __name__ == "__main__":
    key = jax.random.PRNGKey(0)
    N, D, C = 8, 32, 4
    emb = jax.random.normal(key, (N, D), dtype=jnp.float32)
    classes = jnp.array([0, 0, 1, 1, 2, 2, 3, 3], dtype=jnp.int32)
    label = jax.nn.one_hot(classes, C, dtype=jnp.float32)   # label matrix for label @ label.T

    margin = 0.3
    for normalize in (False, True):
        loss, prec = triplet_loss(emb, label, margin, normalize_feature=normalize)
        loss = jax.block_until_ready(loss)
        prec = jax.block_until_ready(prec)

        ref_loss, ref_prec = _reference_loss(emb, label, margin, normalize_feature=normalize)
        ref_loss = jax.block_until_ready(ref_loss)

        assert jnp.isfinite(loss) and jnp.isfinite(prec), ("non-finite output", loss, prec)
        assert jnp.allclose(loss, ref_loss, rtol=1e-4, atol=1e-4), (loss, ref_loss)
        assert jnp.allclose(prec, ref_prec, rtol=1e-4, atol=1e-4), (prec, ref_prec)

    print("KERNEL_OK")
</pallas_src>

<mosaic_0001>
module attributes {stable_mosaic.version = 11 : i64} {
  func.func @_triplet_kernel(%arg0: i32, %arg1: memref<1x1xf32, #tpu.memory_space<smem>>, %arg2: memref<128x32xf32, #tpu.memory_space<vmem>>, %arg3: memref<128x32xf32, #tpu.memory_space<vmem>>, %arg4: memref<128x4xf32, #tpu.memory_space<vmem>>, %arg5: memref<128x4xf32, #tpu.memory_space<vmem>>, %arg6: memref<128x1xf32, #tpu.memory_space<vmem>>, %arg7: memref<1x128xf32, #tpu.memory_space<vmem>>, %arg8: memref<1x1x128xf32, #tpu.memory_space<vmem>>) attributes {dimension_semantics = [#tpu.dimension_semantics<parallel>], iteration_bounds = array<i64: 1>, scalar_prefetch = 0 : i64, scratch_operands = 0 : i64, tpu.core_type = #tpu.core_type<tc>, window_params = [{transform_indices = @transform_0, window_bounds = array<i64: 1, 1>}, {transform_indices = @transform_1, window_bounds = array<i64: 128, 32>}, {pipeline_mode = #tpu.pipeline_mode<synchronous>, transform_indices = @transform_2, window_bounds = array<i64: 128, 32>}, {transform_indices = @transform_3, window_bounds = array<i64: 128, 4>}, {pipeline_mode = #tpu.pipeline_mode<synchronous>, transform_indices = @transform_4, window_bounds = array<i64: 128, 4>}, {transform_indices = @transform_5, window_bounds = array<i64: 128, 1>}, {pipeline_mode = #tpu.pipeline_mode<synchronous>, transform_indices = @transform_6, window_bounds = array<i64: 1, 128>}, {transform_indices = @transform_7, window_bounds = array<i64: 1, 1, 128>}]} {
    %c0 = arith.constant 0 : index
    %c0_0 = arith.constant 0 : index
    %0 = vector.load %arg2[%c0, %c0_0] : memref<128x32xf32, #tpu.memory_space<vmem>>, vector<128x32xf32>
    %c0_1 = arith.constant 0 : index
    %c0_2 = arith.constant 0 : index
    %1 = vector.load %arg3[%c0_1, %c0_2] : memref<128x32xf32, #tpu.memory_space<vmem>>, vector<128x32xf32>
    %cst = arith.constant dense<0.000000e+00> : vector<128x128xf32>
    %2 = tpu.matmul %0, %1, %cst {dimension_numbers = #tpu.dot_dimension_numbers<[1], [1], [0], [0], [0, 0, 1, 0], [], []>} : vector<128x32xf32>, vector<128x32xf32>, vector<128x128xf32> -> vector<128x128xf32>
    %c0_3 = arith.constant 0 : index
    %c0_4 = arith.constant 0 : index
    %3 = vector.load %arg4[%c0_3, %c0_4] : memref<128x4xf32, #tpu.memory_space<vmem>>, vector<128x4xf32>
    %c0_5 = arith.constant 0 : index
    %c0_6 = arith.constant 0 : index
    %4 = vector.load %arg5[%c0_5, %c0_6] : memref<128x4xf32, #tpu.memory_space<vmem>>, vector<128x4xf32>
    %cst_7 = arith.constant dense<0.000000e+00> : vector<128x128xf32>
    %5 = tpu.matmul %3, %4, %cst_7 {dimension_numbers = #tpu.dot_dimension_numbers<[1], [1], [0], [0], [0, 0, 1, 0], [], []>} : vector<128x4xf32>, vector<128x4xf32>, vector<128x128xf32> -> vector<128x128xf32>
    %c0_8 = arith.constant 0 : index
    %c0_9 = arith.constant 0 : index
    %6 = vector.load %arg6[%c0_8, %c0_9] : memref<128x1xf32, #tpu.memory_space<vmem>>, vector<128x1xf32>
    %c0_10 = arith.constant 0 : index
    %c0_11 = arith.constant 0 : index
    %7 = vector.load %arg7[%c0_10, %c0_11] : memref<1x128xf32, #tpu.memory_space<vmem>>, vector<1x128xf32>
    %8 = vector.broadcast %6 : vector<128x1xf32> to vector<128x128xf32>
    %9 = vector.broadcast %7 : vector<1x128xf32> to vector<128x128xf32>
    %10 = arith.addf %8, %9 : vector<128x128xf32>
    %cst_12 = arith.constant 2.000000e+00 : f32
    %11 = vector.broadcast %cst_12 : f32 to vector<128x128xf32>
    %12 = arith.mulf %11, %2 : vector<128x128xf32>
    %13 = arith.subf %10, %12 : vector<128x128xf32>
    %cst_13 = arith.constant 9.99999996E-13 : f32
    %14 = vector.broadcast %cst_13 : f32 to vector<128x128xf32>
    %15 = arith.maximumf %13, %14 : vector<128x128xf32>
    %16 = tpu.iota {dimensions = array<i32: 1>} : vector<128x128xi32>
    %c8_i32 = arith.constant 8 : i32
    %17 = vector.broadcast %c8_i32 : i32 to vector<128x128xi32>
    %18 = arith.cmpi slt, %16, %17 : vector<128x128xi32>
    %c0_14 = arith.constant 0 : index
    %c0_15 = arith.constant 0 : index
    %19 = memref.load %arg1[%c0_14, %c0_15] : memref<1x1xf32, #tpu.memory_space<smem>>
    %20 = vector.broadcast %19 : f32 to vector<128x128xf32>
    %21 = arith.cmpf ogt, %5, %20 : vector<128x128xf32>
    %22 = arith.andi %21, %18 : vector<128x128xi1>
    %23 = vector.broadcast %19 : f32 to vector<128x128xf32>
    %24 = arith.cmpf ole, %5, %23 : vector<128x128xf32>
    %25 = arith.andi %24, %18 : vector<128x128xi1>
    %cst_16 = arith.constant 0xFF800000 : f32
    %26 = vector.broadcast %cst_16 : f32 to vector<128x128xf32>
    %27 = arith.select %22, %15, %26 : vector<128x128xi1>, vector<128x128xf32>
    %cst_17 = arith.constant dense<0xFF800000> : vector<128xf32>
    %28 = vector.multi_reduction <maximumf>, %27, %cst_17 [1] : vector<128x128xf32> to vector<128xf32>
    %29 = vector.shape_cast %28 : vector<128xf32> to vector<128x1xf32>
    %cst_18 = arith.constant 0x7F800000 : f32
    %30 = vector.broadcast %cst_18 : f32 to vector<128x128xf32>
    %31 = arith.select %25, %15, %30 : vector<128x128xi1>, vector<128x128xf32>
    %cst_19 = arith.constant dense<0x7F800000> : vector<128xf32>
    %32 = vector.multi_reduction <minimumf>, %31, %cst_19 [1] : vector<128x128xf32> to vector<128xf32>
    %33 = vector.shape_cast %32 : vector<128xf32> to vector<128x1xf32>
    %cst_20 = arith.constant 0xFF800000 : f32
    %34 = vector.broadcast %cst_20 : f32 to vector<128x128xf32>
    %35 = arith.select %18, %15, %34 : vector<128x128xi1>, vector<128x128xf32>
    %cst_21 = arith.constant dense<0xFF800000> : vector<128xf32>
    %36 = vector.multi_reduction <maximumf>, %35, %cst_21 [1] : vector<128x128xf32> to vector<128xf32>
    %37 = vector.shape_cast %36 : vector<128xf32> to vector<128x1xf32>
    %cst_22 = arith.constant 0x7F800000 : f32
    %38 = vector.broadcast %cst_22 : f32 to vector<128x128xf32>
    %39 = arith.select %18, %15, %38 : vector<128x128xi1>, vector<128x128xf32>
    %cst_23 = arith.constant dense<0x7F800000> : vector<128xf32>
    %40 = vector.multi_reduction <minimumf>, %39, %cst_23 [1] : vector<128x128xf32> to vector<128xf32>
    %41 = vector.shape_cast %40 : vector<128xf32> to vector<128x1xf32>
    %cst_24 = arith.constant 0xFF800000 : f32
    %42 = vector.broadcast %cst_24 : f32 to vector<128x1xf32>
    %43 = arith.cmpf ogt, %29, %42 : vector<128x1xf32>
    %cst_25 = arith.constant 0x7F800000 : f32
    %44 = vector.broadcast %cst_25 : f32 to vector<128x1xf32>
    %45 = arith.cmpf olt, %33, %44 : vector<128x1xf32>
    %cst_26 = arith.constant 9.99999996E-13 : f32
    %46 = vector.broadcast %cst_26 : f32 to vector<128x1xf32>
    %47 = arith.maximumf %29, %46 : vector<128x1xf32>
    %48 = math.sqrt %47 : vector<128x1xf32>
    %cst_27 = arith.constant 9.99999996E-13 : f32
    %49 = vector.broadcast %cst_27 : f32 to vector<128x1xf32>
    %50 = arith.maximumf %37, %49 : vector<128x1xf32>
    %51 = math.sqrt %50 : vector<128x1xf32>
    %cst_28 = arith.constant 9.999000e+03 : f32
    %52 = vector.broadcast %cst_28 : f32 to vector<128x1xf32>
    %53 = arith.subf %51, %52 : vector<128x1xf32>
    %54 = arith.select %43, %48, %53 : vector<128x1xi1>, vector<128x1xf32>
    %cst_29 = arith.constant 9.99999996E-13 : f32
    %55 = vector.broadcast %cst_29 : f32 to vector<128x1xf32>
    %56 = arith.maximumf %33, %55 : vector<128x1xf32>
    %57 = math.sqrt %56 : vector<128x1xf32>
    %cst_30 = arith.constant 9.99999996E-13 : f32
    %58 = vector.broadcast %cst_30 : f32 to vector<128x1xf32>
    %59 = arith.maximumf %41, %58 : vector<128x1xf32>
    %60 = math.sqrt %59 : vector<128x1xf32>
    %cst_31 = arith.constant 9.999000e+03 : f32
    %61 = vector.broadcast %cst_31 : f32 to vector<128x1xf32>
    %62 = arith.addf %60, %61 : vector<128x1xf32>
    %63 = arith.select %45, %57, %62 : vector<128x1xi1>, vector<128x1xf32>
    %64 = tpu.iota {dimensions = array<i32: 0>} : vector<128x1xi32>
    %c128_i32 = arith.constant 128 : i32
    %65 = arith.muli %arg0, %c128_i32 : i32
    %66 = vector.broadcast %65 : i32 to vector<128x1xi32>
    %67 = arith.addi %64, %66 : vector<128x1xi32>
    %c8_i32_32 = arith.constant 8 : i32
    %68 = vector.broadcast %c8_i32_32 : i32 to vector<128x1xi32>
    %69 = arith.cmpi slt, %67, %68 : vector<128x1xi32>
    %70 = arith.subf %54, %63 : vector<128x1xf32>
    %cst_33 = arith.constant 3.000000e-01 : f32
    %71 = vector.broadcast %cst_33 : f32 to vector<128x1xf32>
    %72 = arith.addf %70, %71 : vector<128x1xf32>
    %cst_34 = arith.constant 0.000000e+00 : f32
    %73 = vector.broadcast %cst_34 : f32 to vector<128x1xf32>
    %74 = arith.maximumf %72, %73 : vector<128x1xf32>
    %cst_35 = arith.constant 0.000000e+00 : f32
    %75 = vector.broadcast %cst_35 : f32 to vector<128x1xf32>
    %76 = arith.select %69, %74, %75 : vector<128x1xi1>, vector<128x1xf32>
    %77 = vector.shape_cast %76 : vector<128x1xf32> to vector<1x128x1xf32>
    %cst_36 = arith.constant dense<0.000000e+00> : vector<1xf32>
    %78 = vector.multi_reduction <add>, %77, %cst_36 [1, 2] : vector<1x128x1xf32> to vector<1xf32>
    %79 = vector.shape_cast %78 : vector<1xf32> to vector<1x1x1xf32>
    %80 = vector.extract %79[0, 0, 0] : f32 from vector<1x1x1xf32>
    %81 = arith.cmpf ogt, %63, %54 : vector<128x1xf32>
    %82 = arith.andi %69, %81 : vector<128x1xi1>
    %cst_37 = arith.constant 1.000000e+00 : f32
    %cst_38 = arith.constant 0.000000e+00 : f32
    %83 = vector.broadcast %cst_37 : f32 to vector<128x1xf32>
    %84 = vector.broadcast %cst_38 : f32 to vector<128x1xf32>
    %85 = arith.select %82, %83, %84 : vector<128x1xi1>, vector<128x1xf32>
    %86 = vector.shape_cast %85 : vector<128x1xf32> to vector<1x128x1xf32>
    %cst_39 = arith.constant dense<0.000000e+00> : vector<1xf32>
    %87 = vector.multi_reduction <add>, %86, %cst_39 [1, 2] : vector<1x128x1xf32> to vector<1xf32>
    %88 = vector.shape_cast %87 : vector<1xf32> to vector<1x1x1xf32>
    %89 = vector.extract %88[0, 0, 0] : f32 from vector<1x1x1xf32>
    %90 = tpu.iota {dimensions = array<i32: 2>} : vector<1x1x128xi32>
    %c0_i32 = arith.constant 0 : i32
    %91 = vector.broadcast %c0_i32 : i32 to vector<1x1x128xi32>
    %92 = arith.cmpi eq, %90, %91 : vector<1x1x128xi32>
    %c1_i32 = arith.constant 1 : i32
    %93 = vector.broadcast %c1_i32 : i32 to vector<1x1x128xi32>
    %94 = arith.cmpi eq, %90, %93 : vector<1x1x128xi32>
    %cst_40 = arith.constant 0.000000e+00 : f32
    %95 = vector.broadcast %89 : f32 to vector<1x1x128xf32>
    %96 = vector.broadcast %cst_40 : f32 to vector<1x1x128xf32>
    %97 = arith.select %94, %95, %96 : vector<1x1x128xi1>, vector<1x1x128xf32>
    %98 = vector.broadcast %80 : f32 to vector<1x1x128xf32>
    %99 = arith.select %92, %98, %97 : vector<1x1x128xi1>, vector<1x1x128xf32>
    %c0_41 = arith.constant 0 : index
    %c0_42 = arith.constant 0 : index
    %c0_43 = arith.constant 0 : index
    %100 = vector.load %arg8[%c0_41, %c0_42, %c0_43] : memref<1x1x128xf32, #tpu.memory_space<vmem>>, vector<1x1x128xf32>
    tpu.vector_store %arg8[%c0_41, %c0_42, %c0_43], %99 {strides = array<i32>} : memref<1x1x128xf32, #tpu.memory_space<vmem>>, vector<1x1x128xf32>,
    return
  }
  func.func @transform_0(%arg0: i32) -> (i32, i32) {
    %c0_i32 = arith.constant 0 : i32
    %c0_i32_0 = arith.constant 0 : i32
    %c0_i32_1 = arith.constant 0 : i32
    return %c0_i32, %c0_i32_0 : i32, i32
  }
  func.func @transform_1(%arg0: i32) -> (i32, i32) {
    %c0_i32 = arith.constant 0 : i32
    %c0_i32_0 = arith.constant 0 : i32
    return %arg0, %c0_i32 : i32, i32
  }
  func.func @transform_2(%arg0: i32) -> (i32, i32) {
    %c0_i32 = arith.constant 0 : i32
    %c0_i32_0 = arith.constant 0 : i32
    %c0_i32_1 = arith.constant 0 : i32
    return %c0_i32, %c0_i32_0 : i32, i32
  }
  func.func @transform_3(%arg0: i32) -> (i32, i32) {
    %c0_i32 = arith.constant 0 : i32
    %c0_i32_0 = arith.constant 0 : i32
    return %arg0, %c0_i32 : i32, i32
  }
  func.func @transform_4(%arg0: i32) -> (i32, i32) {
    %c0_i32 = arith.constant 0 : i32
    %c0_i32_0 = arith.constant 0 : i32
    %c0_i32_1 = arith.constant 0 : i32
    return %c0_i32, %c0_i32_0 : i32, i32
  }
  func.func @transform_5(%arg0: i32) -> (i32, i32) {
    %c0_i32 = arith.constant 0 : i32
    %c0_i32_0 = arith.constant 0 : i32
    return %arg0, %c0_i32 : i32, i32
  }
  func.func @transform_6(%arg0: i32) -> (i32, i32) {
    %c0_i32 = arith.constant 0 : i32
    %c0_i32_0 = arith.constant 0 : i32
    %c0_i32_1 = arith.constant 0 : i32
    return %c0_i32, %c0_i32_0 : i32, i32
  }
  func.func @transform_7(%arg0: i32) -> (i32, i32, i32) {
    %c0_i32 = arith.constant 0 : i32
    %c0_i32_0 = arith.constant 0 : i32
    %c0_i32_1 = arith.constant 0 : i32
    return %arg0, %c0_i32, %c0_i32_0 : i32, i32, i32
  }
}

</mosaic_0001>

<llo_original>
// kernel: triplet_loss.1
$region0: #{triplet_loss.1}
  #allocation0 [shape = 'u32[]', space=smem, size = 0x4, offset = 0x4, fixed_abs, tag = 'smem constant byte address 0x4 - core index']
  #allocation1 [shape = 'u32[72,128]{1,0:T(1,128)}', space=vmem, size = 0x9000, scoped, tag = 'internal scratch']
  #allocation2 [shape = 'f32[1,1]{1,0:T(1,128)S(6)}', space=smem, size = 0x200, scoped, tag = 'scoped memory for triplet_loss.1']
  %s0 = inlined_call_operand.<no memory space> [shape: f32[1,1], index: 0, kind: input, shape index: {}]
  %s1 = inlined_call_operand.vmem [shape: f32[128,32], index: 1, kind: input, shape index: {}, may-alias: {1,2}]
  %s2 = inlined_call_operand.vmem [shape: f32[128,32], index: 2, kind: input, shape index: {}, may-alias: {1,2}]
  %s3 = inlined_call_operand.vmem [shape: f32[128,4], index: 3, kind: input, shape index: {}, may-alias: {3,4}]
  %s4 = inlined_call_operand.vmem [shape: f32[128,4], index: 4, kind: input, shape index: {}, may-alias: {3,4}]
  %s5 = inlined_call_operand.vmem [shape: f32[128,1], index: 5, kind: input, shape index: {}]
  %s6 = inlined_call_operand.vmem [shape: f32[1,128], index: 6, kind: input, shape index: {}]
  %s7 = inlined_call_operand.vmem [shape: f32[1,1,128], index: 7, kind: output, shape index: {}]
  %s8 = sld [smem:[#allocation0]]
  $region38: #{triplet_loss.1} parent=0
    _
  %s10 = ssub.s32 1, %s8
  %s11 = scalar_select 0, %s10, %s8
  %12 = sst [smem:[#allocation2]] %s0
  // Predicated region
  $region2: #{triplet_loss.1} parent=0 // pred_check
    _
  $region3: #{triplet_loss.1} parent=0 // pred_check_branch
    %14 = sbr.rel (0) target = $region5
  $region4: #{triplet_loss.1} parent=0 // pred_region
    _
  $region5: #{triplet_loss.1} parent=0 // pred_fallthru
    _
  // Predicated region
  $region6: #{triplet_loss.1} parent=0 // pred_check
    _
  $region7: #{triplet_loss.1} parent=0 // pred_check_branch
    %16 = sbr.rel (0) target = $region9
  $region8: #{triplet_loss.1} parent=0 // pred_region
    _
  $region9: #{triplet_loss.1} parent=0 // pred_fallthru
    _
  // Predicated region
  $region10: #{triplet_loss.1} parent=0 // pred_check
    _
  $region11: #{triplet_loss.1} parent=0 // pred_check_branch
    %18 = sbr.rel (0) target = $region13
  $region12: #{triplet_loss.1} parent=0 // pred_region
    _
  $region13: #{triplet_loss.1} parent=0 // pred_fallthru
    _
  // Predicated region
  $region14: #{triplet_loss.1} parent=0 // pred_check
    _
  $region15: #{triplet_loss.1} parent=0 // pred_check_branch
    %20 = sbr.rel (0) target = $region17
  $region16: #{triplet_loss.1} parent=0 // pred_region
    _
  $region17: #{triplet_loss.1} parent=0 // pred_fallthru
    _
  // Predicated region
  $region18: #{triplet_loss.1} parent=0 // pred_check
    _
  $region19: #{triplet_loss.1} parent=0 // pred_check_branch
    %22 = sbr.rel (0) target = $region21
  $region20: #{triplet_loss.1} parent=0 // pred_region
    _
  $region21: #{triplet_loss.1} parent=0 // pred_fallthru
    _
  // Predicated region
  $region22: #{triplet_loss.1} parent=0 // pred_check
    _
  $region23: #{triplet_loss.1} parent=0 // pred_check_branch
    %24 = sbr.rel (0) target = $region25
  $region24: #{triplet_loss.1} parent=0 // pred_region
    _
  $region25: #{triplet_loss.1} parent=0 // pred_fallthru
    _
  // Predicated region
  $region26: #{triplet_loss.1} parent=0 // pred_check
    _
  $region27: #{triplet_loss.1} parent=0 // pred_check_branch
    %26 = sbr.rel (0) target = $region29
  $region28: #{triplet_loss.1} parent=0 // pred_region
    _
  $region29: #{triplet_loss.1} parent=0 // pred_fallthru
    _
  %v27 = vld [vmem:[%s1] sm:$0xff]
  %v28 = vld [vmem:[%s1 + $0x8] sm:$0xff]
  %v29 = vld [vmem:[%s1 + $0x10] sm:$0xff]
  %v30 = vld [vmem:[%s1 + $0x18] sm:$0xff]
  %v31 = vld [vmem:[%s1 + $0x20] sm:$0xff]
  %v32 = vld [vmem:[%s1 + $0x28] sm:$0xff]
  %v33 = vld [vmem:[%s1 + $0x30] sm:$0xff]
  %v34 = vld [vmem:[%s1 + $0x38] sm:$0xff]
  %v35 = vld [vmem:[%s1 + $0x40] sm:$0xff]
  %v36 = vld [vmem:[%s1 + $0x48] sm:$0xff]
  %v37 = vld [vmem:[%s1 + $0x50] sm:$0xff]
  %v38 = vld [vmem:[%s1 + $0x58] sm:$0xff]
  %v39 = vld [vmem:[%s1 + $0x60] sm:$0xff]
  %v40 = vld [vmem:[%s1 + $0x68] sm:$0xff]
  %v41 = vld [vmem:[%s1 + $0x70] sm:$0xff]
  %v42 = vld [vmem:[%s1 + $0x78] sm:$0xff]
  %v43 = vld [vmem:[%s2] sm:$0xff]
  %v44 = vld [vmem:[%s2 + $0x8] sm:$0xff]
  %v45 = vld [vmem:[%s2 + $0x10] sm:$0xff]
  %v46 = vld [vmem:[%s2 + $0x18] sm:$0xff]
  %v47 = vld [vmem:[%s2 + $0x20] sm:$0xff]
  %v48 = vld [vmem:[%s2 + $0x28] sm:$0xff]
  %v49 = vld [vmem:[%s2 + $0x30] sm:$0xff]
  %v50 = vld [vmem:[%s2 + $0x38] sm:$0xff]
  %v51 = vld [vmem:[%s2 + $0x40] sm:$0xff]
  %v52 = vld [vmem:[%s2 + $0x48] sm:$0xff]
  %v53 = vld [vmem:[%s2 + $0x50] sm:$0xff]
  %v54 = vld [vmem:[%s2 + $0x58] sm:$0xff]
  %v55 = vld [vmem:[%s2 + $0x60] sm:$0xff]
  %v56 = vld [vmem:[%s2 + $0x68] sm:$0xff]
  %v57 = vld [vmem:[%s2 + $0x70] sm:$0xff]
  %v58 = vld [vmem:[%s2 + $0x78] sm:$0xff]
  %vm59 = vcmask 261120
  %v61 = vsel %vm59, %v27, 0
  %v64 = vsel %vm59, %v28, 0
  %v67 = vsel %vm59, %v29, 0
  %v70 = vsel %vm59, %v30, 0
  %v73 = vsel %vm59, %v31, 0
  %v76 = vsel %vm59, %v32, 0
  %v79 = vsel %vm59, %v33, 0
  %v82 = vsel %vm59, %v34, 0
  %v85 = vsel %vm59, %v35, 0
  %v88 = vsel %vm59, %v36, 0
  %v91 = vsel %vm59, %v37, 0
  %v94 = vsel %vm59, %v38, 0
  %v97 = vsel %vm59, %v39, 0
  %v100 = vsel %vm59, %v40, 0
  %v103 = vsel %vm59, %v41, 0
  %v106 = vsel %vm59, %v42, 0
  %v109 = vsel %vm59, %v43, 0
  %v112 = vsel %vm59, %v44, 0
  %v115 = vsel %vm59, %v45, 0
  %v118 = vsel %vm59, %v46, 0
  %v121 = vsel %vm59, %v47, 0
  %v124 = vsel %vm59, %v48, 0
  %v127 = vsel %vm59, %v49, 0
  %v130 = vsel %vm59, %v50, 0
  %v133 = vsel %vm59, %v51, 0
  %v136 = vsel %vm59, %v52, 0
  %v139 = vsel %vm59, %v53, 0
  %v142 = vsel %vm59, %v54, 0
  %v145 = vsel %vm59, %v55, 0
  %v148 = vsel %vm59, %v56, 0
  %v151 = vsel %vm59, %v57, 0
  %v154 = vsel %vm59, %v58, 0
  %156 = vmatpush.xpose.msra.mxu0 %v154
  %157 = vmatpush.xpose.msra.mxu0 %v151
  %158 = vmatpush.xpose.msra.mxu0 %v148
  %159 = vmatpush.xpose.msra.mxu0 %v145
  %160 = vmatpush.xpose.msra.mxu0 %v142
  %161 = vmatpush.xpose.msra.mxu0 %v139
  %162 = vmatpush.xpose.msra.mxu0 %v136
  %163 = vmatpush.xpose.msra.mxu0 %v133
  %164 = vmatpush.xpose.msra.mxu0 %v130
  %165 = vmatpush.xpose.msra.mxu0 %v127
  %166 = vmatpush.xpose.msra.mxu0 %v124
  %167 = vmatpush.xpose.msra.mxu0 %v121
  %168 = vmatpush.xpose.msra.mxu0 %v118
  %169 = vmatpush.xpose.msra.mxu0 %v115
  %170 = vmatpush.xpose.msra.mxu0 %v112
  %171 = vmatpush.xpose.msra.mxu0 %v109
  %172 = vmatmul.f32.gmra.mxu0 %v61
  %v173 = vpop.f32.mrf.mxu0
  %v174 = vadd.f32 0.0, %v173
  %175 = vmatmul.f32.gmra.mxu0 %v64
  %v176 = vpop.f32.mrf.mxu0
  %v177 = vadd.f32 0.0, %v176
  %178 = vmatmul.f32.gmra.mxu0 %v67
  %v179 = vpop.f32.mrf.mxu0
  %v180 = vadd.f32 0.0, %v179
  %181 = vmatmul.f32.gmra.mxu0 %v70
  %v182 = vpop.f32.mrf.mxu0
  %v183 = vadd.f32 0.0, %v182
  %184 = vmatmul.f32.gmra.mxu0 %v73
  %v185 = vpop.f32.mrf.mxu0
  %v186 = vadd.f32 0.0, %v185
  %187 = vmatmul.f32.gmra.mxu0 %v76
  %v188 = vpop.f32.mrf.mxu0
  %v189 = vadd.f32 0.0, %v188
  %190 = vmatmul.f32.gmra.mxu0 %v79
  %v191 = vpop.f32.mrf.mxu0
  %v192 = vadd.f32 0.0, %v191
  %193 = vmatmul.f32.gmra.mxu0 %v82
  %v194 = vpop.f32.mrf.mxu0
  %v195 = vadd.f32 0.0, %v194
  %196 = vmatmul.f32.gmra.mxu0 %v85
  %v197 = vpop.f32.mrf.mxu0
  %v198 = vadd.f32 0.0, %v197
  %199 = vmatmul.f32.gmra.mxu0 %v88
  %v200 = vpop.f32.mrf.mxu0
  %v201 = vadd.f32 0.0, %v200
  %202 = vmatmul.f32.gmra.mxu0 %v91
  %v203 = vpop.f32.mrf.mxu0
  %v204 = vadd.f32 0.0, %v203
  %205 = vmatmul.f32.gmra.mxu0 %v94
  %v206 = vpop.f32.mrf.mxu0
  %v207 = vadd.f32 0.0, %v206
  %208 = vmatmul.f32.gmra.mxu0 %v97
  %v209 = vpop.f32.mrf.mxu0
  %v210 = vadd.f32 0.0, %v209
  %211 = vmatmul.f32.gmra.mxu0 %v100
  %v212 = vpop.f32.mrf.mxu0
  %v213 = vadd.f32 0.0, %v212
  %214 = vmatmul.f32.gmra.mxu0 %v103
  %v215 = vpop.f32.mrf.mxu0
  %v216 = vadd.f32 0.0, %v215
  %217 = vmatmul.f32.gmra.mxu0 %v106
  %v218 = vpop.f32.mrf.mxu0
  %v219 = vadd.f32 0.0, %v218
  %220 = vdwg.mxu0
  %v221 = vld [vmem:[%s3] sm:$0xff]
  %v222 = vld [vmem:[%s3 + $0x8] sm:$0xff]
  %v223 = vld [vmem:[%s3 + $0x10] sm:$0xff]
  %v224 = vld [vmem:[%s3 + $0x18] sm:$0xff]
  %v225 = vld [vmem:[%s3 + $0x20] sm:$0xff]
  %v226 = vld [vmem:[%s3 + $0x28] sm:$0xff]
  %v227 = vld [vmem:[%s3 + $0x30] sm:$0xff]
  %v228 = vld [vmem:[%s3 + $0x38] sm:$0xff]
  %v229 = vld [vmem:[%s3 + $0x40] sm:$0xff]
  %v230 = vld [vmem:[%s3 + $0x48] sm:$0xff]
  %v231 = vld [vmem:[%s3 + $0x50] sm:$0xff]
  %v232 = vld [vmem:[%s3 + $0x58] sm:$0xff]
  %v233 = vld [vmem:[%s3 + $0x60] sm:$0xff]
  %v234 = vld [vmem:[%s3 + $0x68] sm:$0xff]
  %v235 = vld [vmem:[%s3 + $0x70] sm:$0xff]
  %v236 = vld [vmem:[%s3 + $0x78] sm:$0xff]
  %v237 = vld [vmem:[%s4] sm:$0xff]
  %v238 = vld [vmem:[%s4 + $0x8] sm:$0xff]
  %v239 = vld [vmem:[%s4 + $0x10] sm:$0xff]
  %v240 = vld [vmem:[%s4 + $0x18] sm:$0xff]
  %v241 = vld [vmem:[%s4 + $0x20] sm:$0xff]
  %v242 = vld [vmem:[%s4 + $0x28] sm:$0xff]
  %v243 = vld [vmem:[%s4 + $0x30] sm:$0xff]
  %v244 = vld [vmem:[%s4 + $0x38] sm:$0xff]
  %v245 = vld [vmem:[%s4 + $0x40] sm:$0xff]
  %v246 = vld [vmem:[%s4 + $0x48] sm:$0xff]
  %v247 = vld [vmem:[%s4 + $0x50] sm:$0xff]
  %v248 = vld [vmem:[%s4 + $0x58] sm:$0xff]
  %v249 = vld [vmem:[%s4 + $0x60] sm:$0xff]
  %v250 = vld [vmem:[%s4 + $0x68] sm:$0xff]
  %v251 = vld [vmem:[%s4 + $0x70] sm:$0xff]
  %v252 = vld [vmem:[%s4 + $0x78] sm:$0xff]
  %vm253 = vcmask 31744
  %v255 = vsel %vm253, %v221, 0
  %v258 = vsel %vm253, %v222, 0
  %v261 = vsel %vm253, %v223, 0
  %v264 = vsel %vm253, %v224, 0
  %v267 = vsel %vm253, %v225, 0
  %v270 = vsel %vm253, %v226, 0
  %v273 = vsel %vm253, %v227, 0
  %v276 = vsel %vm253, %v228, 0
  %v279 = vsel %vm253, %v229, 0
  %v282 = vsel %vm253, %v230, 0
  %v285 = vsel %vm253, %v231, 0
  %v288 = vsel %vm253, %v232, 0
  %v291 = vsel %vm253, %v233, 0
  %v294 = vsel %vm253, %v234, 0
  %v297 = vsel %vm253, %v235, 0
  %v300 = vsel %vm253, %v236, 0
  %v303 = vsel %vm253, %v237, 0
  %v306 = vsel %vm253, %v238, 0
  %v309 = vsel %vm253, %v239, 0
  %v312 = vsel %vm253, %v240, 0
  %v315 = vsel %vm253, %v241, 0
  %v318 = vsel %vm253, %v242, 0
  %v321 = vsel %vm253, %v243, 0
  %v324 = vsel %vm253, %v244, 0
  %v327 = vsel %vm253, %v245, 0
  %v330 = vsel %vm253, %v246, 0
  %v333 = vsel %vm253, %v247, 0
  %v336 = vsel %vm253, %v248, 0
  %v339 = vsel %vm253, %v249, 0
  %v342 = vsel %vm253, %v250, 0
  %v345 = vsel %vm253, %v251, 0
  %v348 = vsel %vm253, %v252, 0
  %350 = vmatpush.xpose.msra.mxu0 %v348
  %351 = vmatpush.xpose.msra.mxu0 %v345
  %352 = vmatpush.xpose.msra.mxu0 %v342
  %353 = vmatpush.xpose.msra.mxu0 %v339
  %354 = vmatpush.xpose.msra.mxu0 %v336
  %355 = vmatpush.xpose.msra.mxu0 %v333
  %356 = vmatpush.xpose.msra.mxu0 %v330
  %357 = vmatpush.xpose.msra.mxu0 %v327
  %358 = vmatpush.xpose.msra.mxu0 %v324
  %359 = vmatpush.xpose.msra.mxu0 %v321
  %360 = vmatpush.xpose.msra.mxu0 %v318
  %361 = vmatpush.xpose.msra.mxu0 %v315
  %362 = vmatpush.xpose.msra.mxu0 %v312
  %363 = vmatpush.xpose.msra.mxu0 %v309
  %364 = vmatpush.xpose.msra.mxu0 %v306
  %365 = vmatpush.xpose.msra.mxu0 %v303
  %366 = vmatmul.f32.gmra.mxu0 %v255
  %v367 = vpop.f32.mrf.mxu0
  %v368 = vadd.f32 0.0, %v367
  %369 = vmatmul.f32.gmra.mxu0 %v258
  %v370 = vpop.f32.mrf.mxu0
  %v371 = vadd.f32 0.0, %v370
  %372 = vmatmul.f32.gmra.mxu0 %v261
  %v373 = vpop.f32.mrf.mxu0
  %v374 = vadd.f32 0.0, %v373
  %375 = vmatmul.f32.gmra.mxu0 %v264
  %v376 = vpop.f32.mrf.mxu0
  %v377 = vadd.f32 0.0, %v376
  %378 = vmatmul.f32.gmra.mxu0 %v267
  %v379 = vpop.f32.mrf.mxu0
  %v380 = vadd.f32 0.0, %v379
  %381 = vmatmul.f32.gmra.mxu0 %v270
  %v382 = vpop.f32.mrf.mxu0
  %v383 = vadd.f32 0.0, %v382
  %384 = vmatmul.f32.gmra.mxu0 %v273
  %v385 = vpop.f32.mrf.mxu0
  %v386 = vadd.f32 0.0, %v385
  %387 = vmatmul.f32.gmra.mxu0 %v276
  %v388 = vpop.f32.mrf.mxu0
  %v389 = vadd.f32 0.0, %v388
  %390 = vmatmul.f32.gmra.mxu0 %v279
  %v391 = vpop.f32.mrf.mxu0
  %v392 = vadd.f32 0.0, %v391
  %393 = vmatmul.f32.gmra.mxu0 %v282
  %v394 = vpop.f32.mrf.mxu0
  %v395 = vadd.f32 0.0, %v394
  %396 = vmatmul.f32.gmra.mxu0 %v285
  %v397 = vpop.f32.mrf.mxu0
  %v398 = vadd.f32 0.0, %v397
  %399 = vmatmul.f32.gmra.mxu0 %v288
  %v400 = vpop.f32.mrf.mxu0
  %v401 = vadd.f32 0.0, %v400
  %402 = vmatmul.f32.gmra.mxu0 %v291
  %v403 = vpop.f32.mrf.mxu0
  %v404 = vadd.f32 0.0, %v403
  %405 = vmatmul.f32.gmra.mxu0 %v294
  %v406 = vpop.f32.mrf.mxu0
  %v407 = vadd.f32 0.0, %v406
  %408 = vmatmul.f32.gmra.mxu0 %v297
  %v409 = vpop.f32.mrf.mxu0
  %v410 = vadd.f32 0.0, %v409
  %411 = vmatmul.f32.gmra.mxu0 %v300
  %v412 = vpop.f32.mrf.mxu0
  %v413 = vadd.f32 0.0, %v412
  %414 = vdwg.mxu0
  %v415 = vld [vmem:[%s5] sm:$0xff]
  %v416 = vld [vmem:[%s5 + $0x8] sm:$0xff]
  %v417 = vld [vmem:[%s5 + $0x10] sm:$0xff]
  %v418 = vld [vmem:[%s5 + $0x18] sm:$0xff]
  %v419 = vld [vmem:[%s5 + $0x20] sm:$0xff]
  %v420 = vld [vmem:[%s5 + $0x28] sm:$0xff]
  %v421 = vld [vmem:[%s5 + $0x30] sm:$0xff]
  %v422 = vld [vmem:[%s5 + $0x38] sm:$0xff]
  %v423 = vld [vmem:[%s5 + $0x40] sm:$0xff]
  %v424 = vld [vmem:[%s5 + $0x48] sm:$0xff]
  %v425 = vld [vmem:[%s5 + $0x50] sm:$0xff]
  %v426 = vld [vmem:[%s5 + $0x58] sm:$0xff]
  %v427 = vld [vmem:[%s5 + $0x60] sm:$0xff]
  %v428 = vld [vmem:[%s5 + $0x68] sm:$0xff]
  %v429 = vld [vmem:[%s5 + $0x70] sm:$0xff]
  %v430 = vld [vmem:[%s5 + $0x78] sm:$0xff]
  %v431 = vld [vmem:[%s6] sm:$0x1]
  %433 = vset.pattern.permute.xlu0 0
  %434 = vperm.xlu0 %433, %v415
  %v435 = vpop.permute.xlu0 %434
  %438 = vset.pattern.permute.xlu0 0
  %439 = vperm.xlu0 %438, %v416
  %v440 = vpop.permute.xlu0 %439
  %443 = vset.pattern.permute.xlu0 0
  %444 = vperm.xlu0 %443, %v417
  %v445 = vpop.permute.xlu0 %444
  %448 = vset.pattern.permute.xlu0 0
  %449 = vperm.xlu0 %448, %v418
  %v450 = vpop.permute.xlu0 %449
  %453 = vset.pattern.permute.xlu0 0
  %454 = vperm.xlu0 %453, %v419
  %v455 = vpop.permute.xlu0 %454
  %458 = vset.pattern.permute.xlu0 0
  %459 = vperm.xlu0 %458, %v420
  %v460 = vpop.permute.xlu0 %459
  %463 = vset.pattern.permute.xlu0 0
  %464 = vperm.xlu0 %463, %v421
  %v465 = vpop.permute.xlu0 %464
  %468 = vset.pattern.permute.xlu0 0
  %469 = vperm.xlu0 %468, %v422
  %v470 = vpop.permute.xlu0 %469
  %473 = vset.pattern.permute.xlu0 0
  %474 = vperm.xlu0 %473, %v423
  %v475 = vpop.permute.xlu0 %474
  %478 = vset.pattern.permute.xlu0 0
  %479 = vperm.xlu0 %478, %v424
  %v480 = vpop.permute.xlu0 %479
  %483 = vset.pattern.permute.xlu0 0
  %484 = vperm.xlu0 %483, %v425
  %v485 = vpop.permute.xlu0 %484
  %488 = vset.pattern.permute.xlu0 0
  %489 = vperm.xlu0 %488, %v426
  %v490 = vpop.permute.xlu0 %489
  %493 = vset.pattern.permute.xlu0 0
  %494 = vperm.xlu0 %493, %v427
  %v495 = vpop.permute.xlu0 %494
  %498 = vset.pattern.permute.xlu0 0
  %499 = vperm.xlu0 %498, %v428
  %v500 = vpop.permute.xlu0 %499
  %503 = vset.pattern.permute.xlu0 0
  %504 = vperm.xlu0 %503, %v429
  %v505 = vpop.permute.xlu0 %504
  %508 = vset.pattern.permute.xlu0 0
  %509 = vperm.xlu0 %508, %v430
  %v510 = vpop.permute.xlu0 %509
  %v513 = vperm.slane %v431, 0
  %v515 = vadd.f32 %v435, %v513
  %v516 = vadd.f32 %v440, %v513
  %v517 = vadd.f32 %v445, %v513
  %v518 = vadd.f32 %v450, %v513
  %v519 = vadd.f32 %v455, %v513
  %v520 = vadd.f32 %v460, %v513
  %v521 = vadd.f32 %v465, %v513
  %v522 = vadd.f32 %v470, %v513
  %v523 = vadd.f32 %v475, %v513
  %v524 = vadd.f32 %v480, %v513
  %v525 = vadd.f32 %v485, %v513
  %v526 = vadd.f32 %v490, %v513
  %v527 = vadd.f32 %v495, %v513
  %v528 = vadd.f32 %v500, %v513
  %v529 = vadd.f32 %v505, %v513
  %v530 = vadd.f32 %v510, %v513
  %v531 = vmul.f32 %v174, 2.0
  %v532 = vmul.f32 %v177, 2.0
  %v533 = vmul.f32 %v180, 2.0
  %v534 = vmul.f32 %v183, 2.0
  %v535 = vmul.f32 %v186, 2.0
  %v536 = vmul.f32 %v189, 2.0
  %v537 = vmul.f32 %v192, 2.0
  %v538 = vmul.f32 %v195, 2.0
  %v539 = vmul.f32 %v198, 2.0
  %v540 = vmul.f32 %v201, 2.0
  %v541 = vmul.f32 %v204, 2.0
  %v542 = vmul.f32 %v207, 2.0
  %v543 = vmul.f32 %v210, 2.0
  %v544 = vmul.f32 %v213, 2.0
  %v545 = vmul.f32 %v216, 2.0
  %v546 = vmul.f32 %v219, 2.0
  %v547 = vsub.f32 %v515, %v531
  %v548 = vsub.f32 %v516, %v532
  %v549 = vsub.f32 %v517, %v533
  %v550 = vsub.f32 %v518, %v534
  %v551 = vsub.f32 %v519, %v535
  %v552 = vsub.f32 %v520, %v536
  %v553 = vsub.f32 %v521, %v537
  %v554 = vsub.f32 %v522, %v538
  %v555 = vsub.f32 %v523, %v539
  %v556 = vsub.f32 %v524, %v540
  %v557 = vsub.f32 %v525, %v541
  %v558 = vsub.f32 %v526, %v542
  %v559 = vsub.f32 %v527, %v543
  %v560 = vsub.f32 %v528, %v544
  %v561 = vsub.f32 %v529, %v545
  %v562 = vsub.f32 %v530, %v546
  %v563 = vmax.f32 %v547, 1e-12
  %v564 = vmax.f32 %v548, 1e-12
  %v565 = vmax.f32 %v549, 1e-12
  %v566 = vmax.f32 %v550, 1e-12
  %v567 = vmax.f32 %v551, 1e-12
  %v568 = vmax.f32 %v552, 1e-12
  %v569 = vmax.f32 %v553, 1e-12
  %v570 = vmax.f32 %v554, 1e-12
  %v571 = vmax.f32 %v555, 1e-12
  %v572 = vmax.f32 %v556, 1e-12
  %v573 = vmax.f32 %v557, 1e-12
  %v574 = vmax.f32 %v558, 1e-12
  %v575 = vmax.f32 %v559, 1e-12
  %v576 = vmax.f32 %v560, 1e-12
  %v577 = vmax.f32 %v561, 1e-12
  %v578 = vmax.f32 %v562, 1e-12
  %v579 = vlaneseq
  %v580 = vand.u32 %v579, 127
  %vm581 = vcmp.lt.s32.totalorder %v580, 8
  %s582 = sld [smem:[#allocation2]]
  %v583 = vstv %s582
  %vm584 = vcmp.gt.f32.partialorder %v368, %v583
  %vm585 = vcmp.gt.f32.partialorder %v371, %v583
  %vm586 = vcmp.gt.f32.partialorder %v374, %v583
  %vm587 = vcmp.gt.f32.partialorder %v377, %v583
  %vm588 = vcmp.gt.f32.partialorder %v380, %v583
  %vm589 = vcmp.gt.f32.partialorder %v383, %v583
  %vm590 = vcmp.gt.f32.partialorder %v386, %v583
  %vm591 = vcmp.gt.f32.partialorder %v389, %v583
  %vm592 = vcmp.gt.f32.partialorder %v392, %v583
  %vm593 = vcmp.gt.f32.partialorder %v395, %v583
  %vm594 = vcmp.gt.f32.partialorder %v398, %v583
  %vm595 = vcmp.gt.f32.partialorder %v401, %v583
  %vm596 = vcmp.gt.f32.partialorder %v404, %v583
  %vm597 = vcmp.gt.f32.partialorder %v407, %v583
  %vm598 = vcmp.gt.f32.partialorder %v410, %v583
  %vm599 = vcmp.gt.f32.partialorder %v413, %v583
  %vm600 = vmand %vm584, %vm581
  %vm601 = vmand %vm585, %vm581
  %vm602 = vmand %vm586, %vm581
  %vm603 = vmand %vm587, %vm581
  %vm604 = vmand %vm588, %vm581
  %vm605 = vmand %vm589, %vm581
  %vm606 = vmand %vm590, %vm581
  %vm607 = vmand %vm591, %vm581
  %vm608 = vmand %vm592, %vm581
  %vm609 = vmand %vm593, %vm581
  %vm610 = vmand %vm594, %vm581
  %vm611 = vmand %vm595, %vm581
  %vm612 = vmand %vm596, %vm581
  %vm613 = vmand %vm597, %vm581
  %vm614 = vmand %vm598, %vm581
  %vm615 = vmand %vm599, %vm581
  %vm616 = vcmp.le.f32.partialorder %v368, %v583
  %vm617 = vcmp.le.f32.partialorder %v371, %v583
  %vm618 = vcmp.le.f32.partialorder %v374, %v583
  %vm619 = vcmp.le.f32.partialorder %v377, %v583
  %vm620 = vcmp.le.f32.partialorder %v380, %v583
  %vm621 = vcmp.le.f32.partialorder %v383, %v583
  %vm622 = vcmp.le.f32.partialorder %v386, %v583
  %vm623 = vcmp.le.f32.partialorder %v389, %v583
  %vm624 = vcmp.le.f32.partialorder %v392, %v583
  %vm625 = vcmp.le.f32.partialorder %v395, %v583
  %vm626 = vcmp.le.f32.partialorder %v398, %v583
  %vm627 = vcmp.le.f32.partialorder %v401, %v583
  %vm628 = vcmp.le.f32.partialorder %v404, %v583
  %vm629 = vcmp.le.f32.partialorder %v407, %v583
  %vm630 = vcmp.le.f32.partialorder %v410, %v583
  %vm631 = vcmp.le.f32.partialorder %v413, %v583
  %vm632 = vmand %vm616, %vm581
  %vm633 = vmand %vm617, %vm581
  %vm634 = vmand %vm618, %vm581
  %vm635 = vmand %vm619, %vm581
  %vm636 = vmand %vm620, %vm581
  %vm637 = vmand %vm621, %vm581
  %vm638 = vmand %vm622, %vm581
  %vm639 = vmand %vm623, %vm581
  %vm640 = vmand %vm624, %vm581
  %vm641 = vmand %vm625, %vm581
  %vm642 = vmand %vm626, %vm581
  %vm643 = vmand %vm627, %vm581
  %vm644 = vmand %vm628, %vm581
  %vm645 = vmand %vm629, %vm581
  %vm646 = vmand %vm630, %vm581
  %vm647 = vmand %vm631, %vm581
  %v648 = vsel %vm600, %v563, -inf
  %v649 = vsel %vm601, %v564, -inf
  %v650 = vsel %vm602, %v565, -inf
  %v651 = vsel %vm603, %v566, -inf
  %v652 = vsel %vm604, %v567, -inf
  %v653 = vsel %vm605, %v568, -inf
  %v654 = vsel %vm606, %v569, -inf
  %v655 = vsel %vm607, %v570, -inf
  %v656 = vsel %vm608, %v571, -inf
  %v657 = vsel %vm609, %v572, -inf
  %v658 = vsel %vm610, %v573, -inf
  %v659 = vsel %vm611, %v574, -inf
  %v660 = vsel %vm612, %v575, -inf
  %v661 = vsel %vm613, %v576, -inf
  %v662 = vsel %vm614, %v577, -inf
  %v663 = vsel %vm615, %v578, -inf
  %664 = vmax.xlane.f32.xlu0 %v648
  %v665 = vpop.xlane.xlu0 %664
  %666 = vmax.xlane.f32.xlu0 %v649
  %v667 = vpop.xlane.xlu0 %666
  %668 = vmax.xlane.f32.xlu0 %v650
  %v669 = vpop.xlane.xlu0 %668
  %670 = vmax.xlane.f32.xlu0 %v651
  %v671 = vpop.xlane.xlu0 %670
  %672 = vmax.xlane.f32.xlu0 %v652
  %v673 = vpop.xlane.xlu0 %672
  %674 = vmax.xlane.f32.xlu0 %v653
  %v675 = vpop.xlane.xlu0 %674
  %676 = vmax.xlane.f32.xlu0 %v654
  %v677 = vpop.xlane.xlu0 %676
  %678 = vmax.xlane.f32.xlu0 %v655
  %v679 = vpop.xlane.xlu0 %678
  %680 = vmax.xlane.f32.xlu0 %v656
  %v681 = vpop.xlane.xlu0 %680
  %682 = vmax.xlane.f32.xlu0 %v657
  %v683 = vpop.xlane.xlu0 %682
  %684 = vmax.xlane.f32.xlu0 %v658
  %v685 = vpop.xlane.xlu0 %684
  %686 = vmax.xlane.f32.xlu0 %v659
  %v687 = vpop.xlane.xlu0 %686
  %688 = vmax.xlane.f32.xlu0 %v660
  %v689 = vpop.xlane.xlu0 %688
  %690 = vmax.xlane.f32.xlu0 %v661
  %v691 = vpop.xlane.xlu0 %690
  %692 = vmax.xlane.f32.xlu0 %v662
  %v693 = vpop.xlane.xlu0 %692
  %694 = vmax.xlane.f32.xlu0 %v663
  %v695 = vpop.xlane.xlu0 %694
  %v696 = vsel %vm632, %v563, inf
  %v697 = vsel %vm633, %v564, inf
  %v698 = vsel %vm634, %v565, inf
  %v699 = vsel %vm635, %v566, inf
  %v700 = vsel %vm636, %v567, inf
  %v701 = vsel %vm637, %v568, inf
  %v702 = vsel %vm638, %v569, inf
  %v703 = vsel %vm639, %v570, inf
  %v704 = vsel %vm640, %v571, inf
  %v705 = vsel %vm641, %v572, inf
  %v706 = vsel %vm642, %v573, inf
  %v707 = vsel %vm643, %v574, inf
  %v708 = vsel %vm644, %v575, inf
  %v709 = vsel %vm645, %v576, inf
  %v710 = vsel %vm646, %v577, inf
  %v711 = vsel %vm647, %v578, inf
  %712 = vmin.xlane.f32.xlu0 %v696
  %v713 = vpop.xlane.xlu0 %712
  %714 = vmin.xlane.f32.xlu0 %v697
  %v715 = vpop.xlane.xlu0 %714
  %716 = vmin.xlane.f32.xlu0 %v698
  %v717 = vpop.xlane.xlu0 %716
  %718 = vmin.xlane.f32.xlu0 %v699
  %v719 = vpop.xlane.xlu0 %718
  %720 = vmin.xlane.f32.xlu0 %v700
  %v721 = vpop.xlane.xlu0 %720
  %722 = vmin.xlane.f32.xlu0 %v701
  %v723 = vpop.xlane.xlu0 %722
  %724 = vmin.xlane.f32.xlu0 %v702
  %v725 = vpop.xlane.xlu0 %724
  %726 = vmin.xlane.f32.xlu0 %v703
  %v727 = vpop.xlane.xlu0 %726
  %728 = vmin.xlane.f32.xlu0 %v704
  %v729 = vpop.xlane.xlu0 %728
  %730 = vmin.xlane.f32.xlu0 %v705
  %v731 = vpop.xlane.xlu0 %730
  %732 = vmin.xlane.f32.xlu0 %v706
  %v733 = vpop.xlane.xlu0 %732
  %734 = vmin.xlane.f32.xlu0 %v707
  %v735 = vpop.xlane.xlu0 %734
  %736 = vmin.xlane.f32.xlu0 %v708
  %v737 = vpop.xlane.xlu0 %736
  %738 = vmin.xlane.f32.xlu0 %v709
  %v739 = vpop.xlane.xlu0 %738
  %740 = vmin.xlane.f32.xlu0 %v710
  %v741 = vpop.xlane.xlu0 %740
  %742 = vmin.xlane.f32.xlu0 %v711
  %v743 = vpop.xlane.xlu0 %742
  %v744 = vsel %vm581, %v563, -inf
  %v745 = vsel %vm581, %v564, -inf
  %v746 = vsel %vm581, %v565, -inf
  %v747 = vsel %vm581, %v566, -inf
  %v748 = vsel %vm581, %v567, -inf
  %v749 = vsel %vm581, %v568, -inf
  %v750 = vsel %vm581, %v569, -inf
  %v751 = vsel %vm581, %v570, -inf
  %v752 = vsel %vm581, %v571, -inf
  %v753 = vsel %vm581, %v572, -inf
  %v754 = vsel %vm581, %v573, -inf
  %v755 = vsel %vm581, %v574, -inf
  %v756 = vsel %vm581, %v575, -inf
  %v757 = vsel %vm581, %v576, -inf
  %v758 = vsel %vm581, %v577, -inf
  %v759 = vsel %vm581, %v578, -inf
  %760 = vmax.xlane.f32.xlu0 %v744
  %v761 = vpop.xlane.xlu0 %760
  %762 = vmax.xlane.f32.xlu0 %v745
  %v763 = vpop.xlane.xlu0 %762
  %764 = vmax.xlane.f32.xlu0 %v746
  %v765 = vpop.xlane.xlu0 %764
  %766 = vmax.xlane.f32.xlu0 %v747
  %v767 = vpop.xlane.xlu0 %766
  %768 = vmax.xlane.f32.xlu0 %v748
  %v769 = vpop.xlane.xlu0 %768
  %770 = vmax.xlane.f32.xlu0 %v749
  %v771 = vpop.xlane.xlu0 %770
  %772 = vmax.xlane.f32.xlu0 %v750
  %v773 = vpop.xlane.xlu0 %772
  %774 = vmax.xlane.f32.xlu0 %v751
  %v775 = vpop.xlane.xlu0 %774
  %776 = vmax.xlane.f32.xlu0 %v752
  %v777 = vpop.xlane.xlu0 %776
  %778 = vmax.xlane.f32.xlu0 %v753
  %v779 = vpop.xlane.xlu0 %778
  %780 = vmax.xlane.f32.xlu0 %v754
  %v781 = vpop.xlane.xlu0 %780
  %782 = vmax.xlane.f32.xlu0 %v755
  %v783 = vpop.xlane.xlu0 %782
  %784 = vmax.xlane.f32.xlu0 %v756
  %v785 = vpop.xlane.xlu0 %784
  %786 = vmax.xlane.f32.xlu0 %v757
  %v787 = vpop.xlane.xlu0 %786
  %788 = vmax.xlane.f32.xlu0 %v758
  %v789 = vpop.xlane.xlu0 %788
  %790 = vmax.xlane.f32.xlu0 %v759
  %v791 = vpop.xlane.xlu0 %790
  %v792 = vsel %vm581, %v563, inf
  %v793 = vsel %vm581, %v564, inf
  %v794 = vsel %vm581, %v565, inf
  %v795 = vsel %vm581, %v566, inf
  %v796 = vsel %vm581, %v567, inf
  %v797 = vsel %vm581, %v568, inf
  %v798 = vsel %vm581, %v569, inf
  %v799 = vsel %vm581, %v570, inf
  %v800 = vsel %vm581, %v571, inf
  %v801 = vsel %vm581, %v572, inf
  %v802 = vsel %vm581, %v573, inf
  %v803 = vsel %vm581, %v574, inf
  %v804 = vsel %vm581, %v575, inf
  %v805 = vsel %vm581, %v576, inf
  %v806 = vsel %vm581, %v577, inf
  %v807 = vsel %vm581, %v578, inf
  %808 = vmin.xlane.f32.xlu0 %v792
  %v809 = vpop.xlane.xlu0 %808
  %810 = vmin.xlane.f32.xlu0 %v793
  %v811 = vpop.xlane.xlu0 %810
  %812 = vmin.xlane.f32.xlu0 %v794
  %v813 = vpop.xlane.xlu0 %812
  %814 = vmin.xlane.f32.xlu0 %v795
  %v815 = vpop.xlane.xlu0 %814
  %816 = vmin.xlane.f32.xlu0 %v796
  %v817 = vpop.xlane.xlu0 %816
  %818 = vmin.xlane.f32.xlu0 %v797
  %v819 = vpop.xlane.xlu0 %818
  %820 = vmin.xlane.f32.xlu0 %v798
  %v821 = vpop.xlane.xlu0 %820
  %822 = vmin.xlane.f32.xlu0 %v799
  %v823 = vpop.xlane.xlu0 %822
  %824 = vmin.xlane.f32.xlu0 %v800
  %v825 = vpop.xlane.xlu0 %824
  %826 = vmin.xlane.f32.xlu0 %v801
  %v827 = vpop.xlane.xlu0 %826
  %828 = vmin.xlane.f32.xlu0 %v802
  %v829 = vpop.xlane.xlu0 %828
  %830 = vmin.xlane.f32.xlu0 %v803
  %v831 = vpop.xlane.xlu0 %830
  %832 = vmin.xlane.f32.xlu0 %v804
  %v833 = vpop.xlane.xlu0 %832
  %834 = vmin.xlane.f32.xlu0 %v805
  %v835 = vpop.xlane.xlu0 %834
  %836 = vmin.xlane.f32.xlu0 %v806
  %v837 = vpop.xlane.xlu0 %836
  %838 = vmin.xlane.f32.xlu0 %v807
  %v839 = vpop.xlane.xlu0 %838
  %vm840 = vcmp.gt.f32.partialorder %v665, -inf
  %vm841 = vcmp.gt.f32.partialorder %v667, -inf
  %vm842 = vcmp.gt.f32.partialorder %v669, -inf
  %vm843 = vcmp.gt.f32.partialorder %v671, -inf
  %vm844 = vcmp.gt.f32.partialorder %v673, -inf
  %vm845 = vcmp.gt.f32.partialorder %v675, -inf
  %vm846 = vcmp.gt.f32.partialorder %v677, -inf
  %vm847 = vcmp.gt.f32.partialorder %v679, -inf
  %vm848 = vcmp.gt.f32.partialorder %v681, -inf
  %vm849 = vcmp.gt.f32.partialorder %v683, -inf
  %vm850 = vcmp.gt.f32.partialorder %v685, -inf
  %vm851 = vcmp.gt.f32.partialorder %v687, -inf
  %vm852 = vcmp.gt.f32.partialorder %v689, -inf
  %vm853 = vcmp.gt.f32.partialorder %v691, -inf
  %vm854 = vcmp.gt.f32.partialorder %v693, -inf
  %vm855 = vcmp.gt.f32.partialorder %v695, -inf
  %vm856 = vcmp.lt.f32.partialorder %v713, inf
  %vm857 = vcmp.lt.f32.partialorder %v715, inf
  %vm858 = vcmp.lt.f32.partialorder %v717, inf
  %vm859 = vcmp.lt.f32.partialorder %v719, inf
  %vm860 = vcmp.lt.f32.partialorder %v721, inf
  %vm861 = vcmp.lt.f32.partialorder %v723, inf
  %vm862 = vcmp.lt.f32.partialorder %v725, inf
  %vm863 = vcmp.lt.f32.partialorder %v727, inf
  %vm864 = vcmp.lt.f32.partialorder %v729, inf
  %vm865 = vcmp.lt.f32.partialorder %v731, inf
  %vm866 = vcmp.lt.f32.partialorder %v733, inf
  %vm867 = vcmp.lt.f32.partialorder %v735, inf
  %vm868 = vcmp.lt.f32.partialorder %v737, inf
  %vm869 = vcmp.lt.f32.partialorder %v739, inf
  %vm870 = vcmp.lt.f32.partialorder %v741, inf
  %vm871 = vcmp.lt.f32.partialorder %v743, inf
  %v872 = vmax.f32 %v665, 1e-12
  %v873 = vmax.f32 %v667, 1e-12
  %v874 = vmax.f32 %v669, 1e-12
  %v875 = vmax.f32 %v671, 1e-12
  %v876 = vmax.f32 %v673, 1e-12
  %v877 = vmax.f32 %v675, 1e-12
  %v878 = vmax.f32 %v677, 1e-12
  %v879 = vmax.f32 %v679, 1e-12
  %v880 = vmax.f32 %v681, 1e-12
  %v881 = vmax.f32 %v683, 1e-12
  %v882 = vmax.f32 %v685, 1e-12
  %v883 = vmax.f32 %v687, 1e-12
  %v884 = vmax.f32 %v689, 1e-12
  %v885 = vmax.f32 %v691, 1e-12
  %v886 = vmax.f32 %v693, 1e-12
  %v887 = vmax.f32 %v695, 1e-12
  %v888 = vrsqrt.pop %v872
  %v889 = vmul.f32 %v888, %v872
  %v890 = vmul.f32 %v889, %v888
  %v891 = vmul.f32 0.5, %v890
  %v892 = vsub.f32 1.5, %v891
  %v893 = vmul.f32 %v888, %v892
  %v894 = vmul.f32 %v872, %v893
  %vm895 = vcmp.eq.f32.partialorder %v872, inf
  %v896 = vsel %vm895, %v872, %v894
  %vm897 = vcmp.eq.f32.partialorder %v872, 0.0
  %v898 = vand.u32 %v872, 2147483648
  %v899 = vsel %vm897, %v898, %v896
  %v900 = vrsqrt.pop %v873
  %v901 = vmul.f32 %v900, %v873
  %v902 = vmul.f32 %v901, %v900
  %v903 = vmul.f32 0.5, %v902
  %v904 = vsub.f32 1.5, %v903
  %v905 = vmul.f32 %v900, %v904
  %v906 = vmul.f32 %v873, %v905
  %vm907 = vcmp.eq.f32.partialorder %v873, inf
  %v908 = vsel %vm907, %v873, %v906
  %vm909 = vcmp.eq.f32.partialorder %v873, 0.0
  %v910 = vand.u32 %v873, 2147483648
  %v911 = vsel %vm909, %v910, %v908
  %v912 = vrsqrt.pop %v874
  %v913 = vmul.f32 %v912, %v874
  %v914 = vmul.f32 %v913, %v912
  %v915 = vmul.f32 0.5, %v914
  %v916 = vsub.f32 1.5, %v915
  %v917 = vmul.f32 %v912, %v916
  %v918 = vmul.f32 %v874, %v917
  %vm919 = vcmp.eq.f32.partialorder %v874, inf
  %v920 = vsel %vm919, %v874, %v918
  %vm921 = vcmp.eq.f32.partialorder %v874, 0.0
  %v922 = vand.u32 %v874, 2147483648
  %v923 = vsel %vm921, %v922, %v920
  %v924 = vrsqrt.pop %v875
  %v925 = vmul.f32 %v924, %v875
  %v926 = vmul.f32 %v925, %v924
  %v927 = vmul.f32 0.5, %v926
  %v928 = vsub.f32 1.5, %v927
  %v929 = vmul.f32 %v924, %v928
  %v930 = vmul.f32 %v875, %v929
  %vm931 = vcmp.eq.f32.partialorder %v875, inf
  %v932 = vsel %vm931, %v875, %v930
  %vm933 = vcmp.eq.f32.partialorder %v875, 0.0
  %v934 = vand.u32 %v875, 2147483648
  %v935 = vsel %vm933, %v934, %v932
  %v936 = vrsqrt.pop %v876
  %v937 = vmul.f32 %v936, %v876
  %v938 = vmul.f32 %v937, %v936
  %v939 = vmul.f32 0.5, %v938
  %v940 = vsub.f32 1.5, %v939
  %v941 = vmul.f32 %v936, %v940
  %v942 = vmul.f32 %v876, %v941
  %vm943 = vcmp.eq.f32.partialorder %v876, inf
  %v944 = vsel %vm943, %v876, %v942
  %vm945 = vcmp.eq.f32.partialorder %v876, 0.0
  %v946 = vand.u32 %v876, 2147483648
  %v947 = vsel %vm945, %v946, %v944
  %v948 = vrsqrt.pop %v877
  %v949 = vmul.f32 %v948, %v877
  %v950 = vmul.f32 %v949, %v948
  %v951 = vmul.f32 0.5, %v950
  %v952 = vsub.f32 1.5, %v951
  %v953 = vmul.f32 %v948, %v952
  %v954 = vmul.f32 %v877, %v953
  %vm955 = vcmp.eq.f32.partialorder %v877, inf
  %v956 = vsel %vm955, %v877, %v954
  %vm957 = vcmp.eq.f32.partialorder %v877, 0.0
  %v958 = vand.u32 %v877, 2147483648
  %v959 = vsel %vm957, %v958, %v956
  %v960 = vrsqrt.pop %v878
  %v961 = vmul.f32 %v960, %v878
  %v962 = vmul.f32 %v961, %v960
  %v963 = vmul.f32 0.5, %v962
  %v964 = vsub.f32 1.5, %v963
  %v965 = vmul.f32 %v960, %v964
  %v966 = vmul.f32 %v878, %v965
  %vm967 = vcmp.eq.f32.partialorder %v878, inf
  %v968 = vsel %vm967, %v878, %v966
  %vm969 = vcmp.eq.f32.partialorder %v878, 0.0
  %v970 = vand.u32 %v878, 2147483648
  %v971 = vsel %vm969, %v970, %v968
  %v972 = vrsqrt.pop %v879
  %v973 = vmul.f32 %v972, %v879
  %v974 = vmul.f32 %v973, %v972
  %v975 = vmul.f32 0.5, %v974
  %v976 = vsub.f32 1.5, %v975
  %v977 = vmul.f32 %v972, %v976
  %v978 = vmul.f32 %v879, %v977
  %vm979 = vcmp.eq.f32.partialorder %v879, inf
  %v980 = vsel %vm979, %v879, %v978
  %vm981 = vcmp.eq.f32.partialorder %v879, 0.0
  %v982 = vand.u32 %v879, 2147483648
  %v983 = vsel %vm981, %v982, %v980
  %v984 = vrsqrt.pop %v880
  %v985 = vmul.f32 %v984, %v880
  %v986 = vmul.f32 %v985, %v984
  %v987 = vmul.f32 0.5, %v986
  %v988 = vsub.f32 1.5, %v987
  %v989 = vmul.f32 %v984, %v988
  %v990 = vmul.f32 %v880, %v989
  %vm991 = vcmp.eq.f32.partialorder %v880, inf
  %v992 = vsel %vm991, %v880, %v990
  %vm993 = vcmp.eq.f32.partialorder %v880, 0.0
  %v994 = vand.u32 %v880, 2147483648
  %v995 = vsel %vm993, %v994, %v992
  %v996 = vrsqrt.pop %v881
  %v997 = vmul.f32 %v996, %v881
  %v998 = vmul.f32 %v997, %v996
  %v999 = vmul.f32 0.5, %v998
  %v1000 = vsub.f32 1.5, %v999
  %v1001 = vmul.f32 %v996, %v1000
  %v1002 = vmul.f32 %v881, %v1001
  %vm1003 = vcmp.eq.f32.partialorder %v881, inf
  %v1004 = vsel %vm1003, %v881, %v1002
  %vm1005 = vcmp.eq.f32.partialorder %v881, 0.0
  %v1006 = vand.u32 %v881, 2147483648
  %v1007 = vsel %vm1005, %v1006, %v1004
  %v1008 = vrsqrt.pop %v882
  %v1009 = vmul.f32 %v1008, %v882
  %v1010 = vmul.f32 %v1009, %v1008
  %v1011 = vmul.f32 0.5, %v1010
  %v1012 = vsub.f32 1.5, %v1011
  %v1013 = vmul.f32 %v1008, %v1012
  %v1014 = vmul.f32 %v882, %v1013
  %vm1015 = vcmp.eq.f32.partialorder %v882, inf
  %v1016 = vsel %vm1015, %v882, %v1014
  %vm1017 = vcmp.eq.f32.partialorder %v882, 0.0
  %v1018 = vand.u32 %v882, 2147483648
  %v1019 = vsel %vm1017, %v1018, %v1016
  %v1020 = vrsqrt.pop %v883
  %v1021 = vmul.f32 %v1020, %v883
  %v1022 = vmul.f32 %v1021, %v1020
  %v1023 = vmul.f32 0.5, %v1022
  %v1024 = vsub.f32 1.5, %v1023
  %v1025 = vmul.f32 %v1020, %v1024
  %v1026 = vmul.f32 %v883, %v1025
  %vm1027 = vcmp.eq.f32.partialorder %v883, inf
  %v1028 = vsel %vm1027, %v883, %v1026
  %vm1029 = vcmp.eq.f32.partialorder %v883, 0.0
  %v1030 = vand.u32 %v883, 2147483648
  %v1031 = vsel %vm1029, %v1030, %v1028
  %v1032 = vrsqrt.pop %v884
  %v1033 = vmul.f32 %v1032, %v884
  %v1034 = vmul.f32 %v1033, %v1032
  %v1035 = vmul.f32 0.5, %v1034
  %v1036 = vsub.f32 1.5, %v1035
  %v1037 = vmul.f32 %v1032, %v1036
  %v1038 = vmul.f32 %v884, %v1037
  %vm1039 = vcmp.eq.f32.partialorder %v884, inf
  %v1040 = vsel %vm1039, %v884, %v1038
  %vm1041 = vcmp.eq.f32.partialorder %v884, 0.0
  %v1042 = vand.u32 %v884, 2147483648
  %v1043 = vsel %vm1041, %v1042, %v1040
  %v1044 = vrsqrt.pop %v885
  %v1045 = vmul.f32 %v1044, %v885
  %v1046 = vmul.f32 %v1045, %v1044
  %v1047 = vmul.f32 0.5, %v1046
  %v1048 = vsub.f32 1.5, %v1047
  %v1049 = vmul.f32 %v1044, %v1048
  %v1050 = vmul.f32 %v885, %v1049
  %vm1051 = vcmp.eq.f32.partialorder %v885, inf
  %v1052 = vsel %vm1051, %v885, %v1050
  %vm1053 = vcmp.eq.f32.partialorder %v885, 0.0
  %v1054 = vand.u32 %v885, 2147483648
  %v1055 = vsel %vm1053, %v1054, %v1052
  %v1056 = vrsqrt.pop %v886
  %v1057 = vmul.f32 %v1056, %v886
  %v1058 = vmul.f32 %v1057, %v1056
  %v1059 = vmul.f32 0.5, %v1058
  %v1060 = vsub.f32 1.5, %v1059
  %v1061 = vmul.f32 %v1056, %v1060
  %v1062 = vmul.f32 %v886, %v1061
  %vm1063 = vcmp.eq.f32.partialorder %v886, inf
  %v1064 = vsel %vm1063, %v886, %v1062
  %vm1065 = vcmp.eq.f32.partialorder %v886, 0.0
  %v1066 = vand.u32 %v886, 2147483648
  %v1067 = vsel %vm1065, %v1066, %v1064
  %v1068 = vrsqrt.pop %v887
  %v1069 = vmul.f32 %v1068, %v887
  %v1070 = vmul.f32 %v1069, %v1068
  %v1071 = vmul.f32 0.5, %v1070
  %v1072 = vsub.f32 1.5, %v1071
  %v1073 = vmul.f32 %v1068, %v1072
  %v1074 = vmul.f32 %v887, %v1073
  %vm1075 = vcmp.eq.f32.partialorder %v887, inf
  %v1076 = vsel %vm1075, %v887, %v1074
  %vm1077 = vcmp.eq.f32.partialorder %v887, 0.0
  %v1078 = vand.u32 %v887, 2147483648
  %v1079 = vsel %vm1077, %v1078, %v1076
  %v1080 = vmax.f32 %v761, 1e-12
  %v1081 = vmax.f32 %v763, 1e-12
  %v1082 = vmax.f32 %v765, 1e-12
  %v1083 = vmax.f32 %v767, 1e-12
  %v1084 = vmax.f32 %v769, 1e-12
  %v1085 = vmax.f32 %v771, 1e-12
  %v1086 = vmax.f32 %v773, 1e-12
  %v1087 = vmax.f32 %v775, 1e-12
  %v1088 = vmax.f32 %v777, 1e-12
  %v1089 = vmax.f32 %v779, 1e-12
  %v1090 = vmax.f32 %v781, 1e-12
  %v1091 = vmax.f32 %v783, 1e-12
  %v1092 = vmax.f32 %v785, 1e-12
  %v1093 = vmax.f32 %v787, 1e-12
  %v1094 = vmax.f32 %v789, 1e-12
  %v1095 = vmax.f32 %v791, 1e-12
  %v1096 = vrsqrt.pop %v1080
  %v1097 = vmul.f32 %v1096, %v1080
  %v1098 = vmul.f32 %v1097, %v1096
  %v1099 = vmul.f32 0.5, %v1098
  %v1100 = vsub.f32 1.5, %v1099
  %v1101 = vmul.f32 %v1096, %v1100
  %v1102 = vmul.f32 %v1080, %v1101
  %vm1103 = vcmp.eq.f32.partialorder %v1080, inf
  %v1104 = vsel %vm1103, %v1080, %v1102
  %vm1105 = vcmp.eq.f32.partialorder %v1080, 0.0
  %v1106 = vand.u32 %v1080, 2147483648
  %v1107 = vsel %vm1105, %v1106, %v1104
  %v1108 = vrsqrt.pop %v1081
  %v1109 = vmul.f32 %v1108, %v1081
  %v1110 = vmul.f32 %v1109, %v1108
  %v1111 = vmul.f32 0.5, %v1110
  %v1112 = vsub.f32 1.5, %v1111
  %v1113 = vmul.f32 %v1108, %v1112
  %v1114 = vmul.f32 %v1081, %v1113
  %vm1115 = vcmp.eq.f32.partialorder %v1081, inf
  %v1116 = vsel %vm1115, %v1081, %v1114
  %vm1117 = vcmp.eq.f32.partialorder %v1081, 0.0
  %v1118 = vand.u32 %v1081, 2147483648
  %v1119 = vsel %vm1117, %v1118, %v1116
  %v1120 = vrsqrt.pop %v1082
  %v1121 = vmul.f32 %v1120, %v1082
  %v1122 = vmul.f32 %v1121, %v1120
  %v1123 = vmul.f32 0.5, %v1122
  %v1124 = vsub.f32 1.5, %v1123
  %v1125 = vmul.f32 %v1120, %v1124
  %v1126 = vmul.f32 %v1082, %v1125
  %vm1127 = vcmp.eq.f32.partialorder %v1082, inf
  %v1128 = vsel %vm1127, %v1082, %v1126
  %vm1129 = vcmp.eq.f32.partialorder %v1082, 0.0
  %v1130 = vand.u32 %v1082, 2147483648
  %v1131 = vsel %vm1129, %v1130, %v1128
  %v1132 = vrsqrt.pop %v1083
  %v1133 = vmul.f32 %v1132, %v1083
  %v1134 = vmul.f32 %v1133, %v1132
  %v1135 = vmul.f32 0.5, %v1134
  %v1136 = vsub.f32 1.5, %v1135
  %v1137 = vmul.f32 %v1132, %v1136
  %v1138 = vmul.f32 %v1083, %v1137
  %vm1139 = vcmp.eq.f32.partialorder %v1083, inf
  %v1140 = vsel %vm1139, %v1083, %v1138
  %vm1141 = vcmp.eq.f32.partialorder %v1083, 0.0
  %v1142 = vand.u32 %v1083, 2147483648
  %v1143 = vsel %vm1141, %v1142, %v1140
  %v1144 = vrsqrt.pop %v1084
  %v1145 = vmul.f32 %v1144, %v1084
  %v1146 = vmul.f32 %v1145, %v1144
  %v1147 = vmul.f32 0.5, %v1146
  %v1148 = vsub.f32 1.5, %v1147
  %v1149 = vmul.f32 %v1144, %v1148
  %v1150 = vmul.f32 %v1084, %v1149
  %vm1151 = vcmp.eq.f32.partialorder %v1084, inf
  %v1152 = vsel %vm1151, %v1084, %v1150
  %vm1153 = vcmp.eq.f32.partialorder %v1084, 0.0
  %v1154 = vand.u32 %v1084, 2147483648
  %v1155 = vsel %vm1153, %v1154, %v1152
  %v1156 = vrsqrt.pop %v1085
  %v1157 = vmul.f32 %v1156, %v1085
  %v1158 = vmul.f32 %v1157, %v1156
  %v1159 = vmul.f32 0.5, %v1158
  %v1160 = vsub.f32 1.5, %v1159
  %v1161 = vmul.f32 %v1156, %v1160
  %v1162 = vmul.f32 %v1085, %v1161
  %vm1163 = vcmp.eq.f32.partialorder %v1085, inf
  %v1164 = vsel %vm1163, %v1085, %v1162
  %vm1165 = vcmp.eq.f32.partialorder %v1085, 0.0
  %v1166 = vand.u32 %v1085, 2147483648
  %v1167 = vsel %vm1165, %v1166, %v1164
  %v1168 = vrsqrt.pop %v1086
  %v1169 = vmul.f32 %v1168, %v1086
  %v1170 = vmul.f32 %v1169, %v1168
  %v1171 = vmul.f32 0.5, %v1170
  %v1172 = vsub.f32 1.5, %v1171
  %v1173 = vmul.f32 %v1168, %v1172
  %v1174 = vmul.f32 %v1086, %v1173
  %vm1175 = vcmp.eq.f32.partialorder %v1086, inf
  %v1176 = vsel %vm1175, %v1086, %v1174
  %vm1177 = vcmp.eq.f32.partialorder %v1086, 0.0
  %v1178 = vand.u32 %v1086, 2147483648
  %v1179 = vsel %vm1177, %v1178, %v1176
  %v1180 = vrsqrt.pop %v1087
  %v1181 = vmul.f32 %v1180, %v1087
  %v1182 = vmul.f32 %v1181, %v1180
  %v1183 = vmul.f32 0.5, %v1182
  %v1184 = vsub.f32 1.5, %v1183
  %v1185 = vmul.f32 %v1180, %v1184
  %v1186 = vmul.f32 %v1087, %v1185
  %vm1187 = vcmp.eq.f32.partialorder %v1087, inf
  %v1188 = vsel %vm1187, %v1087, %v1186
  %vm1189 = vcmp.eq.f32.partialorder %v1087, 0.0
  %v1190 = vand.u32 %v1087, 2147483648
  %v1191 = vsel %vm1189, %v1190, %v1188
  %v1192 = vrsqrt.pop %v1088
  %v1193 = vmul.f32 %v1192, %v1088
  %v1194 = vmul.f32 %v1193, %v1192
  %v1195 = vmul.f32 0.5, %v1194
  %v1196 = vsub.f32 1.5, %v1195
  %v1197 = vmul.f32 %v1192, %v1196
  %v1198 = vmul.f32 %v1088, %v1197
  %vm1199 = vcmp.eq.f32.partialorder %v1088, inf
  %v1200 = vsel %vm1199, %v1088, %v1198
  %vm1201 = vcmp.eq.f32.partialorder %v1088, 0.0
  %v1202 = vand.u32 %v1088, 2147483648
  %v1203 = vsel %vm1201, %v1202, %v1200
  %v1204 = vrsqrt.pop %v1089
  %v1205 = vmul.f32 %v1204, %v1089
  %v1206 = vmul.f32 %v1205, %v1204
  %v1207 = vmul.f32 0.5, %v1206
  %v1208 = vsub.f32 1.5, %v1207
  %v1209 = vmul.f32 %v1204, %v1208
  %v1210 = vmul.f32 %v1089, %v1209
  %vm1211 = vcmp.eq.f32.partialorder %v1089, inf
  %v1212 = vsel %vm1211, %v1089, %v1210
  %vm1213 = vcmp.eq.f32.partialorder %v1089, 0.0
  %v1214 = vand.u32 %v1089, 2147483648
  %v1215 = vsel %vm1213, %v1214, %v1212
  %v1216 = vrsqrt.pop %v1090
  %v1217 = vmul.f32 %v1216, %v1090
  %v1218 = vmul.f32 %v1217, %v1216
  %v1219 = vmul.f32 0.5, %v1218
  %v1220 = vsub.f32 1.5, %v1219
  %v1221 = vmul.f32 %v1216, %v1220
  %v1222 = vmul.f32 %v1090, %v1221
  %vm1223 = vcmp.eq.f32.partialorder %v1090, inf
  %v1224 = vsel %vm1223, %v1090, %v1222
  %vm1225 = vcmp.eq.f32.partialorder %v1090, 0.0
  %v1226 = vand.u32 %v1090, 2147483648
  %v1227 = vsel %vm1225, %v1226, %v1224
  %v1228 = vrsqrt.pop %v1091
  %v1229 = vmul.f32 %v1228, %v1091
  %v1230 = vmul.f32 %v1229, %v1228
  %v1231 = vmul.f32 0.5, %v1230
  %v1232 = vsub.f32 1.5, %v1231
  %v1233 = vmul.f32 %v1228, %v1232
  %v1234 = vmul.f32 %v1091, %v1233
  %vm1235 = vcmp.eq.f32.partialorder %v1091, inf
  %v1236 = vsel %vm1235, %v1091, %v1234
  %vm1237 = vcmp.eq.f32.partialorder %v1091, 0.0
  %v1238 = vand.u32 %v1091, 2147483648
  %v1239 = vsel %vm1237, %v1238, %v1236
  %v1240 = vrsqrt.pop %v1092
  %v1241 = vmul.f32 %v1240, %v1092
  %v1242 = vmul.f32 %v1241, %v1240
  %v1243 = vmul.f32 0.5, %v1242
  %v1244 = vsub.f32 1.5, %v1243
  %v1245 = vmul.f32 %v1240, %v1244
  %v1246 = vmul.f32 %v1092, %v1245
  %vm1247 = vcmp.eq.f32.partialorder %v1092, inf
  %v1248 = vsel %vm1247, %v1092, %v1246
  %vm1249 = vcmp.eq.f32.partialorder %v1092, 0.0
  %v1250 = vand.u32 %v1092, 2147483648
  %v1251 = vsel %vm1249, %v1250, %v1248
  %v1252 = vrsqrt.pop %v1093
  %v1253 = vmul.f32 %v1252, %v1093
  %v1254 = vmul.f32 %v1253, %v1252
  %v1255 = vmul.f32 0.5, %v1254
  %v1256 = vsub.f32 1.5, %v1255
  %v1257 = vmul.f32 %v1252, %v1256
  %v1258 = vmul.f32 %v1093, %v1257
  %vm1259 = vcmp.eq.f32.partialorder %v1093, inf
  %v1260 = vsel %vm1259, %v1093, %v1258
  %vm1261 = vcmp.eq.f32.partialorder %v1093, 0.0
  %v1262 = vand.u32 %v1093, 2147483648
  %v1263 = vsel %vm1261, %v1262, %v1260
  %v1264 = vrsqrt.pop %v1094
  %v1265 = vmul.f32 %v1264, %v1094
  %v1266 = vmul.f32 %v1265, %v1264
  %v1267 = vmul.f32 0.5, %v1266
  %v1268 = vsub.f32 1.5, %v1267
  %v1269 = vmul.f32 %v1264, %v1268
  %v1270 = vmul.f32 %v1094, %v1269
  %vm1271 = vcmp.eq.f32.partialorder %v1094, inf
  %v1272 = vsel %vm1271, %v1094, %v1270
  %vm1273 = vcmp.eq.f32.partialorder %v1094, 0.0
  %v1274 = vand.u32 %v1094, 2147483648
  %v1275 = vsel %vm1273, %v1274, %v1272
  %v1276 = vrsqrt.pop %v1095
  %v1277 = vmul.f32 %v1276, %v1095
  %v1278 = vmul.f32 %v1277, %v1276
  %v1279 = vmul.f32 0.5, %v1278
  %v1280 = vsub.f32 1.5, %v1279
  %v1281 = vmul.f32 %v1276, %v1280
  %v1282 = vmul.f32 %v1095, %v1281
  %vm1283 = vcmp.eq.f32.partialorder %v1095, inf
  %v1284 = vsel %vm1283, %v1095, %v1282
  %vm1285 = vcmp.eq.f32.partialorder %v1095, 0.0
  %v1286 = vand.u32 %v1095, 2147483648
  %v1287 = vsel %vm1285, %v1286, %v1284
  %v1288 = vsub.f32 %v1107, 9999.0
  %v1289 = vsub.f32 %v1119, 9999.0
  %v1290 = vsub.f32 %v1131, 9999.0
  %v1291 = vsub.f32 %v1143, 9999.0
  %v1292 = vsub.f32 %v1155, 9999.0
  %v1293 = vsub.f32 %v1167, 9999.0
  %v1294 = vsub.f32 %v1179, 9999.0
  %v1295 = vsub.f32 %v1191, 9999.0
  %v1296 = vsub.f32 %v1203, 9999.0
  %v1297 = vsub.f32 %v1215, 9999.0
  %v1298 = vsub.f32 %v1227, 9999.0
  %v1299 = vsub.f32 %v1239, 9999.0
  %v1300 = vsub.f32 %v1251, 9999.0
  %v1301 = vsub.f32 %v1263, 9999.0
  %v1302 = vsub.f32 %v1275, 9999.0
  %v1303 = vsub.f32 %v1287, 9999.0
  %v1304 = vsel %vm840, %v899, %v1288
  %v1305 = vsel %vm841, %v911, %v1289
  %v1306 = vsel %vm842, %v923, %v1290
  %v1307 = vsel %vm843, %v935, %v1291
  %v1308 = vsel %vm844, %v947, %v1292
  %v1309 = vsel %vm845, %v959, %v1293
  %v1310 = vsel %vm846, %v971, %v1294
  %v1311 = vsel %vm847, %v983, %v1295
  %v1312 = vsel %vm848, %v995, %v1296
  %v1313 = vsel %vm849, %v1007, %v1297
  %v1314 = vsel %vm850, %v1019, %v1298
  %v1315 = vsel %vm851, %v1031, %v1299
  %v1316 = vsel %vm852, %v1043, %v1300
  %v1317 = vsel %vm853, %v1055, %v1301
  %v1318 = vsel %vm854, %v1067, %v1302
  %v1319 = vsel %vm855, %v1079, %v1303
  %v1320 = vmax.f32 %v713, 1e-12
  %v1321 = vmax.f32 %v715, 1e-12
  %v1322 = vmax.f32 %v717, 1e-12
  %v1323 = vmax.f32 %v719, 1e-12
  %v1324 = vmax.f32 %v721, 1e-12
  %v1325 = vmax.f32 %v723, 1e-12
  %v1326 = vmax.f32 %v725, 1e-12
  %v1327 = vmax.f32 %v727, 1e-12
  %v1328 = vmax.f32 %v729, 1e-12
  %v1329 = vmax.f32 %v731, 1e-12
  %v1330 = vmax.f32 %v733, 1e-12
  %v1331 = vmax.f32 %v735, 1e-12
  %v1332 = vmax.f32 %v737, 1e-12
  %v1333 = vmax.f32 %v739, 1e-12
  %v1334 = vmax.f32 %v741, 1e-12
  %v1335 = vmax.f32 %v743, 1e-12
  %v1336 = vrsqrt.pop %v1320
  %v1337 = vmul.f32 %v1336, %v1320
  %v1338 = vmul.f32 %v1337, %v1336
  %v1339 = vmul.f32 0.5, %v1338
  %v1340 = vsub.f32 1.5, %v1339
  %v1341 = vmul.f32 %v1336, %v1340
  %v1342 = vmul.f32 %v1320, %v1341
  %vm1343 = vcmp.eq.f32.partialorder %v1320, inf
  %v1344 = vsel %vm1343, %v1320, %v1342
  %vm1345 = vcmp.eq.f32.partialorder %v1320, 0.0
  %v1346 = vand.u32 %v1320, 2147483648
  %v1347 = vsel %vm1345, %v1346, %v1344
  %v1348 = vrsqrt.pop %v1321
  %v1349 = vmul.f32 %v1348, %v1321
  %v1350 = vmul.f32 %v1349, %v1348
  %v1351 = vmul.f32 0.5, %v1350
  %v1352 = vsub.f32 1.5, %v1351
  %v1353 = vmul.f32 %v1348, %v1352
  %v1354 = vmul.f32 %v1321, %v1353
  %vm1355 = vcmp.eq.f32.partialorder %v1321, inf
  %v1356 = vsel %vm1355, %v1321, %v1354
  %vm1357 = vcmp.eq.f32.partialorder %v1321, 0.0
  %v1358 = vand.u32 %v1321, 2147483648
  %v1359 = vsel %vm1357, %v1358, %v1356
  %v1360 = vrsqrt.pop %v1322
  %v1361 = vmul.f32 %v1360, %v1322
  %v1362 = vmul.f32 %v1361, %v1360
  %v1363 = vmul.f32 0.5, %v1362
  %v1364 = vsub.f32 1.5, %v1363
  %v1365 = vmul.f32 %v1360, %v1364
  %v1366 = vmul.f32 %v1322, %v1365
  %vm1367 = vcmp.eq.f32.partialorder %v1322, inf
  %v1368 = vsel %vm1367, %v1322, %v1366
  %vm1369 = vcmp.eq.f32.partialorder %v1322, 0.0
  %v1370 = vand.u32 %v1322, 2147483648
  %v1371 = vsel %vm1369, %v1370, %v1368
  %v1372 = vrsqrt.pop %v1323
  %v1373 = vmul.f32 %v1372, %v1323
  %v1374 = vmul.f32 %v1373, %v1372
  %v1375 = vmul.f32 0.5, %v1374
  %v1376 = vsub.f32 1.5, %v1375
  %v1377 = vmul.f32 %v1372, %v1376
  %v1378 = vmul.f32 %v1323, %v1377
  %vm1379 = vcmp.eq.f32.partialorder %v1323, inf
  %v1380 = vsel %vm1379, %v1323, %v1378
  %vm1381 = vcmp.eq.f32.partialorder %v1323, 0.0
  %v1382 = vand.u32 %v1323, 2147483648
  %v1383 = vsel %vm1381, %v1382, %v1380
  %v1384 = vrsqrt.pop %v1324
  %v1385 = vmul.f32 %v1384, %v1324
  %v1386 = vmul.f32 %v1385, %v1384
  %v1387 = vmul.f32 0.5, %v1386
  %v1388 = vsub.f32 1.5, %v1387
  %v1389 = vmul.f32 %v1384, %v1388
  %v1390 = vmul.f32 %v1324, %v1389
  %vm1391 = vcmp.eq.f32.partialorder %v1324, inf
  %v1392 = vsel %vm1391, %v1324, %v1390
  %vm1393 = vcmp.eq.f32.partialorder %v1324, 0.0
  %v1394 = vand.u32 %v1324, 2147483648
  %v1395 = vsel %vm1393, %v1394, %v1392
  %v1396 = vrsqrt.pop %v1325
  %v1397 = vmul.f32 %v1396, %v1325
  %v1398 = vmul.f32 %v1397, %v1396
  %v1399 = vmul.f32 0.5, %v1398
  %v1400 = vsub.f32 1.5, %v1399
  %v1401 = vmul.f32 %v1396, %v1400
  %v1402 = vmul.f32 %v1325, %v1401
  %vm1403 = vcmp.eq.f32.partialorder %v1325, inf
  %v1404 = vsel %vm1403, %v1325, %v1402
  %vm1405 = vcmp.eq.f32.partialorder %v1325, 0.0
  %v1406 = vand.u32 %v1325, 2147483648
  %v1407 = vsel %vm1405, %v1406, %v1404
  %v1408 = vrsqrt.pop %v1326
  %v1409 = vmul.f32 %v1408, %v1326
  %v1410 = vmul.f32 %v1409, %v1408
  %v1411 = vmul.f32 0.5, %v1410
  %v1412 = vsub.f32 1.5, %v1411
  %v1413 = vmul.f32 %v1408, %v1412
  %v1414 = vmul.f32 %v1326, %v1413
  %vm1415 = vcmp.eq.f32.partialorder %v1326, inf
  %v1416 = vsel %vm1415, %v1326, %v1414
  %vm1417 = vcmp.eq.f32.partialorder %v1326, 0.0
  %v1418 = vand.u32 %v1326, 2147483648
  %v1419 = vsel %vm1417, %v1418, %v1416
  %v1420 = vrsqrt.pop %v1327
  %v1421 = vmul.f32 %v1420, %v1327
  %v1422 = vmul.f32 %v1421, %v1420
  %v1423 = vmul.f32 0.5, %v1422
  %v1424 = vsub.f32 1.5, %v1423
  %v1425 = vmul.f32 %v1420, %v1424
  %v1426 = vmul.f32 %v1327, %v1425
  %vm1427 = vcmp.eq.f32.partialorder %v1327, inf
  %v1428 = vsel %vm1427, %v1327, %v1426
  %vm1429 = vcmp.eq.f32.partialorder %v1327, 0.0
  %v1430 = vand.u32 %v1327, 2147483648
  %v1431 = vsel %vm1429, %v1430, %v1428
  %v1432 = vrsqrt.pop %v1328
  %v1433 = vmul.f32 %v1432, %v1328
  %v1434 = vmul.f32 %v1433, %v1432
  %v1435 = vmul.f32 0.5, %v1434
  %v1436 = vsub.f32 1.5, %v1435
  %v1437 = vmul.f32 %v1432, %v1436
  %v1438 = vmul.f32 %v1328, %v1437
  %vm1439 = vcmp.eq.f32.partialorder %v1328, inf
  %v1440 = vsel %vm1439, %v1328, %v1438
  %vm1441 = vcmp.eq.f32.partialorder %v1328, 0.0
  %v1442 = vand.u32 %v1328, 2147483648
  %v1443 = vsel %vm1441, %v1442, %v1440
  %v1444 = vrsqrt.pop %v1329
  %v1445 = vmul.f32 %v1444, %v1329
  %v1446 = vmul.f32 %v1445, %v1444
  %v1447 = vmul.f32 0.5, %v1446
  %v1448 = vsub.f32 1.5, %v1447
  %v1449 = vmul.f32 %v1444, %v1448
  %v1450 = vmul.f32 %v1329, %v1449
  %vm1451 = vcmp.eq.f32.partialorder %v1329, inf
  %v1452 = vsel %vm1451, %v1329, %v1450
  %vm1453 = vcmp.eq.f32.partialorder %v1329, 0.0
  %v1454 = vand.u32 %v1329, 2147483648
  %v1455 = vsel %vm1453, %v1454, %v1452
  %v1456 = vrsqrt.pop %v1330
  %v1457 = vmul.f32 %v1456, %v1330
  %v1458 = vmul.f32 %v1457, %v1456
  %v1459 = vmul.f32 0.5, %v1458
  %v1460 = vsub.f32 1.5, %v1459
  %v1461 = vmul.f32 %v1456, %v1460
  %v1462 = vmul.f32 %v1330, %v1461
  %vm1463 = vcmp.eq.f32.partialorder %v1330, inf
  %v1464 = vsel %vm1463, %v1330, %v1462
  %vm1465 = vcmp.eq.f32.partialorder %v1330, 0.0
  %v1466 = vand.u32 %v1330, 2147483648
  %v1467 = vsel %vm1465, %v1466, %v1464
  %v1468 = vrsqrt.pop %v1331
  %v1469 = vmul.f32 %v1468, %v1331
  %v1470 = vmul.f32 %v1469, %v1468
  %v1471 = vmul.f32 0.5, %v1470
  %v1472 = vsub.f32 1.5, %v1471
  %v1473 = vmul.f32 %v1468, %v1472
  %v1474 = vmul.f32 %v1331, %v1473
  %vm1475 = vcmp.eq.f32.partialorder %v1331, inf
  %v1476 = vsel %vm1475, %v1331, %v1474
  %vm1477 = vcmp.eq.f32.partialorder %v1331, 0.0
  %v1478 = vand.u32 %v1331, 2147483648
  %v1479 = vsel %vm1477, %v1478, %v1476
  %v1480 = vrsqrt.pop %v1332
  %v1481 = vmul.f32 %v1480, %v1332
  %v1482 = vmul.f32 %v1481, %v1480
  %v1483 = vmul.f32 0.5, %v1482
  %v1484 = vsub.f32 1.5, %v1483
  %v1485 = vmul.f32 %v1480, %v1484
  %v1486 = vmul.f32 %v1332, %v1485
  %vm1487 = vcmp.eq.f32.partialorder %v1332, inf
  %v1488 = vsel %vm1487, %v1332, %v1486
  %vm1489 = vcmp.eq.f32.partialorder %v1332, 0.0
  %v1490 = vand.u32 %v1332, 2147483648
  %v1491 = vsel %vm1489, %v1490, %v1488
  %v1492 = vrsqrt.pop %v1333
  %v1493 = vmul.f32 %v1492, %v1333
  %v1494 = vmul.f32 %v1493, %v1492
  %v1495 = vmul.f32 0.5, %v1494
  %v1496 = vsub.f32 1.5, %v1495
  %v1497 = vmul.f32 %v1492, %v1496
  %v1498 = vmul.f32 %v1333, %v1497
  %vm1499 = vcmp.eq.f32.partialorder %v1333, inf
  %v1500 = vsel %vm1499, %v1333, %v1498
  %vm1501 = vcmp.eq.f32.partialorder %v1333, 0.0
  %v1502 = vand.u32 %v1333, 2147483648
  %v1503 = vsel %vm1501, %v1502, %v1500
  %v1504 = vrsqrt.pop %v1334
  %v1505 = vmul.f32 %v1504, %v1334
  %v1506 = vmul.f32 %v1505, %v1504
  %v1507 = vmul.f32 0.5, %v1506
  %v1508 = vsub.f32 1.5, %v1507
  %v1509 = vmul.f32 %v1504, %v1508
  %v1510 = vmul.f32 %v1334, %v1509
  %vm1511 = vcmp.eq.f32.partialorder %v1334, inf
  %v1512 = vsel %vm1511, %v1334, %v1510
  %vm1513 = vcmp.eq.f32.partialorder %v1334, 0.0
  %v1514 = vand.u32 %v1334, 2147483648
  %v1515 = vsel %vm1513, %v1514, %v1512
  %v1516 = vrsqrt.pop %v1335
  %v1517 = vmul.f32 %v1516, %v1335
  %v1518 = vmul.f32 %v1517, %v1516
  %v1519 = vmul.f32 0.5, %v1518
  %v1520 = vsub.f32 1.5, %v1519
  %v1521 = vmul.f32 %v1516, %v1520
  %v1522 = vmul.f32 %v1335, %v1521
  %vm1523 = vcmp.eq.f32.partialorder %v1335, inf
  %v1524 = vsel %vm1523, %v1335, %v1522
  %vm1525 = vcmp.eq.f32.partialorder %v1335, 0.0
  %v1526 = vand.u32 %v1335, 2147483648
  %v1527 = vsel %vm1525, %v1526, %v1524
  %v1528 = vmax.f32 %v809, 1e-12
  %v1529 = vmax.f32 %v811, 1e-12
  %v1530 = vmax.f32 %v813, 1e-12
  %v1531 = vmax.f32 %v815, 1e-12
  %v1532 = vmax.f32 %v817, 1e-12
  %v1533 = vmax.f32 %v819, 1e-12
  %v1534 = vmax.f32 %v821, 1e-12
  %v1535 = vmax.f32 %v823, 1e-12
  %v1536 = vmax.f32 %v825, 1e-12
  %v1537 = vmax.f32 %v827, 1e-12
  %v1538 = vmax.f32 %v829, 1e-12
  %v1539 = vmax.f32 %v831, 1e-12
  %v1540 = vmax.f32 %v833, 1e-12
  %v1541 = vmax.f32 %v835, 1e-12
  %v1542 = vmax.f32 %v837, 1e-12
  %v1543 = vmax.f32 %v839, 1e-12
  %v1544 = vrsqrt.pop %v1528
  %v1545 = vmul.f32 %v1544, %v1528
  %v1546 = vmul.f32 %v1545, %v1544
  %v1547 = vmul.f32 0.5, %v1546
  %v1548 = vsub.f32 1.5, %v1547
  %v1549 = vmul.f32 %v1544, %v1548
  %v1550 = vmul.f32 %v1528, %v1549
  %vm1551 = vcmp.eq.f32.partialorder %v1528, inf
  %v1552 = vsel %vm1551, %v1528, %v1550
  %vm1553 = vcmp.eq.f32.partialorder %v1528, 0.0
  %v1554 = vand.u32 %v1528, 2147483648
  %v1555 = vsel %vm1553, %v1554, %v1552
  %v1556 = vrsqrt.pop %v1529
  %v1557 = vmul.f32 %v1556, %v1529
  %v1558 = vmul.f32 %v1557, %v1556
  %v1559 = vmul.f32 0.5, %v1558
  %v1560 = vsub.f32 1.5, %v1559
  %v1561 = vmul.f32 %v1556, %v1560
  %v1562 = vmul.f32 %v1529, %v1561
  %vm1563 = vcmp.eq.f32.partialorder %v1529, inf
  %v1564 = vsel %vm1563, %v1529, %v1562
  %vm1565 = vcmp.eq.f32.partialorder %v1529, 0.0
  %v1566 = vand.u32 %v1529, 2147483648
  %v1567 = vsel %vm1565, %v1566, %v1564
  %v1568 = vrsqrt.pop %v1530
  %v1569 = vmul.f32 %v1568, %v1530
  %v1570 = vmul.f32 %v1569, %v1568
  %v1571 = vmul.f32 0.5, %v1570
  %v1572 = vsub.f32 1.5, %v1571
  %v1573 = vmul.f32 %v1568, %v1572
  %v1574 = vmul.f32 %v1530, %v1573
  %vm1575 = vcmp.eq.f32.partialorder %v1530, inf
  %v1576 = vsel %vm1575, %v1530, %v1574
  %vm1577 = vcmp.eq.f32.partialorder %v1530, 0.0
  %v1578 = vand.u32 %v1530, 2147483648
  %v1579 = vsel %vm1577, %v1578, %v1576
  %v1580 = vrsqrt.pop %v1531
  %v1581 = vmul.f32 %v1580, %v1531
  %v1582 = vmul.f32 %v1581, %v1580
  %v1583 = vmul.f32 0.5, %v1582
  %v1584 = vsub.f32 1.5, %v1583
  %v1585 = vmul.f32 %v1580, %v1584
  %v1586 = vmul.f32 %v1531, %v1585
  %vm1587 = vcmp.eq.f32.partialorder %v1531, inf
  %v1588 = vsel %vm1587, %v1531, %v1586
  %vm1589 = vcmp.eq.f32.partialorder %v1531, 0.0
  %v1590 = vand.u32 %v1531, 2147483648
  %v1591 = vsel %vm1589, %v1590, %v1588
  %v1592 = vrsqrt.pop %v1532
  %v1593 = vmul.f32 %v1592, %v1532
  %v1594 = vmul.f32 %v1593, %v1592
  %v1595 = vmul.f32 0.5, %v1594
  %v1596 = vsub.f32 1.5, %v1595
  %v1597 = vmul.f32 %v1592, %v1596
  %v1598 = vmul.f32 %v1532, %v1597
  %vm1599 = vcmp.eq.f32.partialorder %v1532, inf
  %v1600 = vsel %vm1599, %v1532, %v1598
  %vm1601 = vcmp.eq.f32.partialorder %v1532, 0.0
  %v1602 = vand.u32 %v1532, 2147483648
  %v1603 = vsel %vm1601, %v1602, %v1600
  %v1604 = vrsqrt.pop %v1533
  %v1605 = vmul.f32 %v1604, %v1533
  %v1606 = vmul.f32 %v1605, %v1604
  %v1607 = vmul.f32 0.5, %v1606
  %v1608 = vsub.f32 1.5, %v1607
  %v1609 = vmul.f32 %v1604, %v1608
  %v1610 = vmul.f32 %v1533, %v1609
  %vm1611 = vcmp.eq.f32.partialorder %v1533, inf
  %v1612 = vsel %vm1611, %v1533, %v1610
  %vm1613 = vcmp.eq.f32.partialorder %v1533, 0.0
  %v1614 = vand.u32 %v1533, 2147483648
  %v1615 = vsel %vm1613, %v1614, %v1612
  %v1616 = vrsqrt.pop %v1534
  %v1617 = vmul.f32 %v1616, %v1534
  %v1618 = vmul.f32 %v1617, %v1616
  %v1619 = vmul.f32 0.5, %v1618
  %v1620 = vsub.f32 1.5, %v1619
  %v1621 = vmul.f32 %v1616, %v1620
  %v1622 = vmul.f32 %v1534, %v1621
  %vm1623 = vcmp.eq.f32.partialorder %v1534, inf
  %v1624 = vsel %vm1623, %v1534, %v1622
  %vm1625 = vcmp.eq.f32.partialorder %v1534, 0.0
  %v1626 = vand.u32 %v1534, 2147483648
  %v1627 = vsel %vm1625, %v1626, %v1624
  %v1628 = vrsqrt.pop %v1535
  %v1629 = vmul.f32 %v1628, %v1535
  %v1630 = vmul.f32 %v1629, %v1628
  %v1631 = vmul.f32 0.5, %v1630
  %v1632 = vsub.f32 1.5, %v1631
  %v1633 = vmul.f32 %v1628, %v1632
  %v1634 = vmul.f32 %v1535, %v1633
  %vm1635 = vcmp.eq.f32.partialorder %v1535, inf
  %v1636 = vsel %vm1635, %v1535, %v1634
  %vm1637 = vcmp.eq.f32.partialorder %v1535, 0.0
  %v1638 = vand.u32 %v1535, 2147483648
  %v1639 = vsel %vm1637, %v1638, %v1636
  %v1640 = vrsqrt.pop %v1536
  %v1641 = vmul.f32 %v1640, %v1536
  %v1642 = vmul.f32 %v1641, %v1640
  %v1643 = vmul.f32 0.5, %v1642
  %v1644 = vsub.f32 1.5, %v1643
  %v1645 = vmul.f32 %v1640, %v1644
  %v1646 = vmul.f32 %v1536, %v1645
  %vm1647 = vcmp.eq.f32.partialorder %v1536, inf
  %v1648 = vsel %vm1647, %v1536, %v1646
  %vm1649 = vcmp.eq.f32.partialorder %v1536, 0.0
  %v1650 = vand.u32 %v1536, 2147483648
  %v1651 = vsel %vm1649, %v1650, %v1648
  %v1652 = vrsqrt.pop %v1537
  %v1653 = vmul.f32 %v1652, %v1537
  %v1654 = vmul.f32 %v1653, %v1652
  %v1655 = vmul.f32 0.5, %v1654
  %v1656 = vsub.f32 1.5, %v1655
  %v1657 = vmul.f32 %v1652, %v1656
  %v1658 = vmul.f32 %v1537, %v1657
  %vm1659 = vcmp.eq.f32.partialorder %v1537, inf
  %v1660 = vsel %vm1659, %v1537, %v1658
  %vm1661 = vcmp.eq.f32.partialorder %v1537, 0.0
  %v1662 = vand.u32 %v1537, 2147483648
  %v1663 = vsel %vm1661, %v1662, %v1660
  %v1664 = vrsqrt.pop %v1538
  %v1665 = vmul.f32 %v1664, %v1538
  %v1666 = vmul.f32 %v1665, %v1664
  %v1667 = vmul.f32 0.5, %v1666
  %v1668 = vsub.f32 1.5, %v1667
  %v1669 = vmul.f32 %v1664, %v1668
  %v1670 = vmul.f32 %v1538, %v1669
  %vm1671 = vcmp.eq.f32.partialorder %v1538, inf
  %v1672 = vsel %vm1671, %v1538, %v1670
  %vm1673 = vcmp.eq.f32.partialorder %v1538, 0.0
  %v1674 = vand.u32 %v1538, 2147483648
  %v1675 = vsel %vm1673, %v1674, %v1672
  %v1676 = vrsqrt.pop %v1539
  %v1677 = vmul.f32 %v1676, %v1539
  %v1678 = vmul.f32 %v1677, %v1676
  %v1679 = vmul.f32 0.5, %v1678
  %v1680 = vsub.f32 1.5, %v1679
  %v1681 = vmul.f32 %v1676, %v1680
  %v1682 = vmul.f32 %v1539, %v1681
  %vm1683 = vcmp.eq.f32.partialorder %v1539, inf
  %v1684 = vsel %vm1683, %v1539, %v1682
  %vm1685 = vcmp.eq.f32.partialorder %v1539, 0.0
  %v1686 = vand.u32 %v1539, 2147483648
  %v1687 = vsel %vm1685, %v1686, %v1684
  %v1688 = vrsqrt.pop %v1540
  %v1689 = vmul.f32 %v1688, %v1540
  %v1690 = vmul.f32 %v1689, %v1688
  %v1691 = vmul.f32 0.5, %v1690
  %v1692 = vsub.f32 1.5, %v1691
  %v1693 = vmul.f32 %v1688, %v1692
  %v1694 = vmul.f32 %v1540, %v1693
  %vm1695 = vcmp.eq.f32.partialorder %v1540, inf
  %v1696 = vsel %vm1695, %v1540, %v1694
  %vm1697 = vcmp.eq.f32.partialorder %v1540, 0.0
  %v1698 = vand.u32 %v1540, 2147483648
  %v1699 = vsel %vm1697, %v1698, %v1696
  %v1700 = vrsqrt.pop %v1541
  %v1701 = vmul.f32 %v1700, %v1541
  %v1702 = vmul.f32 %v1701, %v1700
  %v1703 = vmul.f32 0.5, %v1702
  %v1704 = vsub.f32 1.5, %v1703
  %v1705 = vmul.f32 %v1700, %v1704
  %v1706 = vmul.f32 %v1541, %v1705
  %vm1707 = vcmp.eq.f32.partialorder %v1541, inf
  %v1708 = vsel %vm1707, %v1541, %v1706
  %vm1709 = vcmp.eq.f32.partialorder %v1541, 0.0
  %v1710 = vand.u32 %v1541, 2147483648
  %v1711 = vsel %vm1709, %v1710, %v1708
  %v1712 = vrsqrt.pop %v1542
  %v1713 = vmul.f32 %v1712, %v1542
  %v1714 = vmul.f32 %v1713, %v1712
  %v1715 = vmul.f32 0.5, %v1714
  %v1716 = vsub.f32 1.5, %v1715
  %v1717 = vmul.f32 %v1712, %v1716
  %v1718 = vmul.f32 %v1542, %v1717
  %vm1719 = vcmp.eq.f32.partialorder %v1542, inf
  %v1720 = vsel %vm1719, %v1542, %v1718
  %vm1721 = vcmp.eq.f32.partialorder %v1542, 0.0
  %v1722 = vand.u32 %v1542, 2147483648
  %v1723 = vsel %vm1721, %v1722, %v1720
  %v1724 = vrsqrt.pop %v1543
  %v1725 = vmul.f32 %v1724, %v1543
  %v1726 = vmul.f32 %v1725, %v1724
  %v1727 = vmul.f32 0.5, %v1726
  %v1728 = vsub.f32 1.5, %v1727
  %v1729 = vmul.f32 %v1724, %v1728
  %v1730 = vmul.f32 %v1543, %v1729
  %vm1731 = vcmp.eq.f32.partialorder %v1543, inf
  %v1732 = vsel %vm1731, %v1543, %v1730
  %vm1733 = vcmp.eq.f32.partialorder %v1543, 0.0
  %v1734 = vand.u32 %v1543, 2147483648
  %v1735 = vsel %vm1733, %v1734, %v1732
  %v1736 = vadd.f32 %v1555, 9999.0
  %v1737 = vadd.f32 %v1567, 9999.0
  %v1738 = vadd.f32 %v1579, 9999.0
  %v1739 = vadd.f32 %v1591, 9999.0
  %v1740 = vadd.f32 %v1603, 9999.0
  %v1741 = vadd.f32 %v1615, 9999.0
  %v1742 = vadd.f32 %v1627, 9999.0
  %v1743 = vadd.f32 %v1639, 9999.0
  %v1744 = vadd.f32 %v1651, 9999.0
  %v1745 = vadd.f32 %v1663, 9999.0
  %v1746 = vadd.f32 %v1675, 9999.0
  %v1747 = vadd.f32 %v1687, 9999.0
  %v1748 = vadd.f32 %v1699, 9999.0
  %v1749 = vadd.f32 %v1711, 9999.0
  %v1750 = vadd.f32 %v1723, 9999.0
  %v1751 = vadd.f32 %v1735, 9999.0
  %v1752 = vsel %vm856, %v1347, %v1736
  %v1753 = vsel %vm857, %v1359, %v1737
  %v1754 = vsel %vm858, %v1371, %v1738
  %v1755 = vsel %vm859, %v1383, %v1739
  %v1756 = vsel %vm860, %v1395, %v1740
  %v1757 = vsel %vm861, %v1407, %v1741
  %v1758 = vsel %vm862, %v1419, %v1742
  %v1759 = vsel %vm863, %v1431, %v1743
  %v1760 = vsel %vm864, %v1443, %v1744
  %v1761 = vsel %vm865, %v1455, %v1745
  %v1762 = vsel %vm866, %v1467, %v1746
  %v1763 = vsel %vm867, %v1479, %v1747
  %v1764 = vsel %vm868, %v1491, %v1748
  %v1765 = vsel %vm869, %v1503, %v1749
  %v1766 = vsel %vm870, %v1515, %v1750
  %v1767 = vsel %vm871, %v1527, %v1751
  %v1768 = vlaneseq
  %v1769 = vshrl.u32 %v1768, 7
  %v1770 = vadd.s32 %v1769, 8
  %v1771 = vadd.s32 %v1769, 16
  %v1772 = vadd.s32 %v1769, 24
  %v1773 = vadd.s32 %v1769, 32
  %v1774 = vadd.s32 %v1769, 40
  %v1775 = vadd.s32 %v1769, 48
  %v1776 = vadd.s32 %v1769, 56
  %v1777 = vadd.s32 %v1769, 64
  %v1778 = vadd.s32 %v1769, 72
  %v1779 = vadd.s32 %v1769, 80
  %v1780 = vadd.s32 %v1769, 88
  %v1781 = vadd.s32 %v1769, 96
  %v1782 = vadd.s32 %v1769, 104
  %v1783 = vadd.s32 %v1769, 112
  %v1784 = vadd.s32 %v1769, 120
  %s1785 = smul.u32 0, 128
  %v1786 = vstv %s1785
  %v1787 = vadd.s32 %v1769, %v1786
  %v1788 = vadd.s32 %v1770, %v1786
  %v1789 = vadd.s32 %v1771, %v1786
  %v1790 = vadd.s32 %v1772, %v1786
  %v1791 = vadd.s32 %v1773, %v1786
  %v1792 = vadd.s32 %v1774, %v1786
  %v1793 = vadd.s32 %v1775, %v1786
  %v1794 = vadd.s32 %v1776, %v1786
  %v1795 = vadd.s32 %v1777, %v1786
  %v1796 = vadd.s32 %v1778, %v1786
  %v1797 = vadd.s32 %v1779, %v1786
  %v1798 = vadd.s32 %v1780, %v1786
  %v1799 = vadd.s32 %v1781, %v1786
  %v1800 = vadd.s32 %v1782, %v1786
  %v1801 = vadd.s32 %v1783, %v1786
  %v1802 = vadd.s32 %v1784, %v1786
  %vm1803 = vcmp.lt.s32.totalorder %v1787, 8
  %vm1804 = vcmp.lt.s32.totalorder %v1788, 8
  %vm1805 = vcmp.lt.s32.totalorder %v1789, 8
  %vm1806 = vcmp.lt.s32.totalorder %v1790, 8
  %vm1807 = vcmp.lt.s32.totalorder %v1791, 8
  %vm1808 = vcmp.lt.s32.totalorder %v1792, 8
  %vm1809 = vcmp.lt.s32.totalorder %v1793, 8
  %vm1810 = vcmp.lt.s32.totalorder %v1794, 8
  %vm1811 = vcmp.lt.s32.totalorder %v1795, 8
  %vm1812 = vcmp.lt.s32.totalorder %v1796, 8
  %vm1813 = vcmp.lt.s32.totalorder %v1797, 8
  %vm1814 = vcmp.lt.s32.totalorder %v1798, 8
  %vm1815 = vcmp.lt.s32.totalorder %v1799, 8
  %vm1816 = vcmp.lt.s32.totalorder %v1800, 8
  %vm1817 = vcmp.lt.s32.totalorder %v1801, 8
  %vm1818 = vcmp.lt.s32.totalorder %v1802, 8
  %v1819 = vsub.f32 %v1304, %v1752
  %v1820 = vsub.f32 %v1305, %v1753
  %v1821 = vsub.f32 %v1306, %v1754
  %v1822 = vsub.f32 %v1307, %v1755
  %v1823 = vsub.f32 %v1308, %v1756
  %v1824 = vsub.f32 %v1309, %v1757
  %v1825 = vsub.f32 %v1310, %v1758
  %v1826 = vsub.f32 %v1311, %v1759
  %v1827 = vsub.f32 %v1312, %v1760
  %v1828 = vsub.f32 %v1313, %v1761
  %v1829 = vsub.f32 %v1314, %v1762
  %v1830 = vsub.f32 %v1315, %v1763
  %v1831 = vsub.f32 %v1316, %v1764
  %v1832 = vsub.f32 %v1317, %v1765
  %v1833 = vsub.f32 %v1318, %v1766
  %v1834 = vsub.f32 %v1319, %v1767
  %v1835 = vadd.f32 %v1819, 0.3
  %v1836 = vadd.f32 %v1820, 0.3
  %v1837 = vadd.f32 %v1821, 0.3
  %v1838 = vadd.f32 %v1822, 0.3
  %v1839 = vadd.f32 %v1823, 0.3
  %v1840 = vadd.f32 %v1824, 0.3
  %v1841 = vadd.f32 %v1825, 0.3
  %v1842 = vadd.f32 %v1826, 0.3
  %v1843 = vadd.f32 %v1827, 0.3
  %v1844 = vadd.f32 %v1828, 0.3
  %v1845 = vadd.f32 %v1829, 0.3
  %v1846 = vadd.f32 %v1830, 0.3
  %v1847 = vadd.f32 %v1831, 0.3
  %v1848 = vadd.f32 %v1832, 0.3
  %v1849 = vadd.f32 %v1833, 0.3
  %v1850 = vadd.f32 %v1834, 0.3
  %v1851 = vmax.f32 %v1835, 0.0
  %v1852 = vmax.f32 %v1836, 0.0
  %v1853 = vmax.f32 %v1837, 0.0
  %v1854 = vmax.f32 %v1838, 0.0
  %v1855 = vmax.f32 %v1839, 0.0
  %v1856 = vmax.f32 %v1840, 0.0
  %v1857 = vmax.f32 %v1841, 0.0
  %v1858 = vmax.f32 %v1842, 0.0
  %v1859 = vmax.f32 %v1843, 0.0
  %v1860 = vmax.f32 %v1844, 0.0
  %v1861 = vmax.f32 %v1845, 0.0
  %v1862 = vmax.f32 %v1846, 0.0
  %v1863 = vmax.f32 %v1847, 0.0
  %v1864 = vmax.f32 %v1848, 0.0
  %v1865 = vmax.f32 %v1849, 0.0
  %v1866 = vmax.f32 %v1850, 0.0
  %v1867 = vsel %vm1803, %v1851, 0.0
  %v1868 = vsel %vm1804, %v1852, 0.0
  %v1869 = vsel %vm1805, %v1853, 0.0
  %v1870 = vsel %vm1806, %v1854, 0.0
  %v1871 = vsel %vm1807, %v1855, 0.0
  %v1872 = vsel %vm1808, %v1856, 0.0
  %v1873 = vsel %vm1809, %v1857, 0.0
  %v1874 = vsel %vm1810, %v1858, 0.0
  %v1875 = vsel %vm1811, %v1859, 0.0
  %v1876 = vsel %vm1812, %v1860, 0.0
  %v1877 = vsel %vm1813, %v1861, 0.0
  %v1878 = vsel %vm1814, %v1862, 0.0
  %v1879 = vsel %vm1815, %v1863, 0.0
  %v1880 = vsel %vm1816, %v1864, 0.0
  %v1881 = vsel %vm1817, %v1865, 0.0
  %v1882 = vsel %vm1818, %v1866, 0.0
  %vm1883 = vcmask 7168
  %v1884 = vsel %vm1883, %v1867, 0.0
  %v1885 = vsel %vm1883, %v1868, 0.0
  %v1886 = vadd.f32 %v1884, %v1885
  %v1887 = vsel %vm1883, %v1869, 0.0
  %v1888 = vadd.f32 %v1886, %v1887
  %v1889 = vsel %vm1883, %v1870, 0.0
  %v1890 = vadd.f32 %v1888, %v1889
  %v1891 = vsel %vm1883, %v1871, 0.0
  %v1892 = vadd.f32 %v1890, %v1891
  %v1893 = vsel %vm1883, %v1872, 0.0
  %v1894 = vadd.f32 %v1892, %v1893
  %v1895 = vsel %vm1883, %v1873, 0.0
  %v1896 = vadd.f32 %v1894, %v1895
  %v1897 = vsel %vm1883, %v1874, 0.0
  %v1898 = vadd.f32 %v1896, %v1897
  %v1899 = vsel %vm1883, %v1875, 0.0
  %v1900 = vadd.f32 %v1898, %v1899
  %v1901 = vsel %vm1883, %v1876, 0.0
  %v1902 = vadd.f32 %v1900, %v1901
  %v1903 = vsel %vm1883, %v1877, 0.0
  %v1904 = vadd.f32 %v1902, %v1903
  %v1905 = vsel %vm1883, %v1878, 0.0
  %v1906 = vadd.f32 %v1904, %v1905
  %v1907 = vsel %vm1883, %v1879, 0.0
  %v1908 = vadd.f32 %v1906, %v1907
  %v1909 = vsel %vm1883, %v1880, 0.0
  %v1910 = vadd.f32 %v1908, %v1909
  %v1911 = vsel %vm1883, %v1881, 0.0
  %v1912 = vadd.f32 %v1910, %v1911
  %v1913 = vsel %vm1883, %v1882, 0.0
  %v1914 = vadd.f32 %v1912, %v1913
  %1915 = vadd.xlane.f32.xlu0 %v1914
  %v1916 = vpop.xlane.xlu0 %1915
  %v1917 = vrot.slane %v1916, 4
  %v1918 = vadd.f32 %v1916, %v1917
  %v1919 = vrot.slane %v1918, 2
  %v1920 = vadd.f32 %v1918, %v1919
  %v1921 = vrot.slane %v1920, 1
  %v1922 = vadd.f32 %v1920, %v1921
  %s1923 = vtos %v1922
  %vm1924 = vcmp.gt.f32.partialorder %v1752, %v1304
  %vm1925 = vcmp.gt.f32.partialorder %v1753, %v1305
  %vm1926 = vcmp.gt.f32.partialorder %v1754, %v1306
  %vm1927 = vcmp.gt.f32.partialorder %v1755, %v1307
  %vm1928 = vcmp.gt.f32.partialorder %v1756, %v1308
  %vm1929 = vcmp.gt.f32.partialorder %v1757, %v1309
  %vm1930 = vcmp.gt.f32.partialorder %v1758, %v1310
  %vm1931 = vcmp.gt.f32.partialorder %v1759, %v1311
  %vm1932 = vcmp.gt.f32.partialorder %v1760, %v1312
  %vm1933 = vcmp.gt.f32.partialorder %v1761, %v1313
  %vm1934 = vcmp.gt.f32.partialorder %v1762, %v1314
  %vm1935 = vcmp.gt.f32.partialorder %v1763, %v1315
  %vm1936 = vcmp.gt.f32.partialorder %v1764, %v1316
  %vm1937 = vcmp.gt.f32.partialorder %v1765, %v1317
  %vm1938 = vcmp.gt.f32.partialorder %v1766, %v1318
  %vm1939 = vcmp.gt.f32.partialorder %v1767, %v1319
  %vm1940 = vmand %vm1803, %vm1924
  %vm1941 = vmand %vm1804, %vm1925
  %vm1942 = vmand %vm1805, %vm1926
  %vm1943 = vmand %vm1806, %vm1927
  %vm1944 = vmand %vm1807, %vm1928
  %vm1945 = vmand %vm1808, %vm1929
  %vm1946 = vmand %vm1809, %vm1930
  %vm1947 = vmand %vm1810, %vm1931
  %vm1948 = vmand %vm1811, %vm1932
  %vm1949 = vmand %vm1812, %vm1933
  %vm1950 = vmand %vm1813, %vm1934
  %vm1951 = vmand %vm1814, %vm1935
  %vm1952 = vmand %vm1815, %vm1936
  %vm1953 = vmand %vm1816, %vm1937
  %vm1954 = vmand %vm1817, %vm1938
  %vm1955 = vmand %vm1818, %vm1939
  %v1956 = vsel %vm1940, 1.0, 0.0
  %v1957 = vsel %vm1941, 1.0, 0.0
  %v1958 = vsel %vm1942, 1.0, 0.0
  %v1959 = vsel %vm1943, 1.0, 0.0
  %v1960 = vsel %vm1944, 1.0, 0.0
  %v1961 = vsel %vm1945, 1.0, 0.0
  %v1962 = vsel %vm1946, 1.0, 0.0
  %v1963 = vsel %vm1947, 1.0, 0.0
  %v1964 = vsel %vm1948, 1.0, 0.0
  %v1965 = vsel %vm1949, 1.0, 0.0
  %v1966 = vsel %vm1950, 1.0, 0.0
  %v1967 = vsel %vm1951, 1.0, 0.0
  %v1968 = vsel %vm1952, 1.0, 0.0
  %v1969 = vsel %vm1953, 1.0, 0.0
  %v1970 = vsel %vm1954, 1.0, 0.0
  %v1971 = vsel %vm1955, 1.0, 0.0
  %v1972 = vsel %vm1883, %v1956, 0.0
  %v1973 = vsel %vm1883, %v1957, 0.0
  %v1974 = vadd.f32 %v1972, %v1973
  %v1975 = vsel %vm1883, %v1958, 0.0
  %v1976 = vadd.f32 %v1974, %v1975
  %v1977 = vsel %vm1883, %v1959, 0.0
  %v1978 = vadd.f32 %v1976, %v1977
  %v1979 = vsel %vm1883, %v1960, 0.0
  %v1980 = vadd.f32 %v1978, %v1979
  %v1981 = vsel %vm1883, %v1961, 0.0
  %v1982 = vadd.f32 %v1980, %v1981
  %v1983 = vsel %vm1883, %v1962, 0.0
  %v1984 = vadd.f32 %v1982, %v1983
  %v1985 = vsel %vm1883, %v1963, 0.0
  %v1986 = vadd.f32 %v1984, %v1985
  %v1987 = vsel %vm1883, %v1964, 0.0
  %v1988 = vadd.f32 %v1986, %v1987
  %v1989 = vsel %vm1883, %v1965, 0.0
  %v1990 = vadd.f32 %v1988, %v1989
  %v1991 = vsel %vm1883, %v1966, 0.0
  %v1992 = vadd.f32 %v1990, %v1991
  %v1993 = vsel %vm1883, %v1967, 0.0
  %v1994 = vadd.f32 %v1992, %v1993
  %v1995 = vsel %vm1883, %v1968, 0.0
  %v1996 = vadd.f32 %v1994, %v1995
  %v1997 = vsel %vm1883, %v1969, 0.0
  %v1998 = vadd.f32 %v1996, %v1997
  %v1999 = vsel %vm1883, %v1970, 0.0
  %v2000 = vadd.f32 %v1998, %v1999
  %v2001 = vsel %vm1883, %v1971, 0.0
  %v2002 = vadd.f32 %v2000, %v2001
  %2003 = vadd.xlane.f32.xlu0 %v2002
  %v2004 = vpop.xlane.xlu0 %2003
  %v2005 = vrot.slane %v2004, 4
  %v2006 = vadd.f32 %v2004, %v2005
  %v2007 = vrot.slane %v2006, 2
  %v2008 = vadd.f32 %v2006, %v2007
  %v2009 = vrot.slane %v2008, 1
  %v2010 = vadd.f32 %v2008, %v2009
  %s2011 = vtos %v2010
  %vm2012 = vcmp.eq.s32.totalorder %v580, 0
  %vm2013 = vcmp.eq.s32.totalorder %v580, 1
  %v2014 = vstv %s2011
  %v2015 = vsel %vm2013, %v2014, 0.0
  %v2016 = vstv %s1923
  %v2017 = vsel %vm2012, %v2016, %v2015
  %2018 = vst [vmem:[%s7] sm:$0x1] %v2017
  // Predicated region
  $region30: #{triplet_loss.1} parent=0 // pred_check
    _
  $region31: #{triplet_loss.1} parent=0 // pred_check_branch
    %2020 = sbr.rel (0) target = $region33
  $region32: #{triplet_loss.1} parent=0 // pred_region
    _
  $region33: #{triplet_loss.1} parent=0 // pred_fallthru
    _
  // Predicated region
  $region34: #{triplet_loss.1} parent=0 // pred_check
    _
  $region35: #{triplet_loss.1} parent=0 // pred_check_branch
    %2022 = sbr.rel (0) target = $region37
  $region36: #{triplet_loss.1} parent=0 // pred_region
    _
  $region37: #{triplet_loss.1} parent=0 // pred_fallthru
    _

</llo_original>
